<compile_context>
chip_gen: v7x
topology: tpu7x:2x2x1
jax: 0.10.0
libtpu: 0.0.40
codegen_flags: <defaults>
</compile_context>

<pallas_src>
import jax
import jax.numpy as jnp
from jax.experimental import pallas as pl
from jax.experimental.pallas import tpu as pltpu


def _mlp_kernel(x_ref,
                w1_ref, b1_ref,
                w2_ref, b2_ref,
                w3_ref, b3_ref,
                w4_ref, b4_ref,
                w5t_ref, b5_ref,
                o_ref):
    """5-layer sigmoid MLP on one tile of `tm` embedded rows.

    Matmuls run in bf16 on the MXU with f32 accumulation; bias-add + sigmoid
    stay in f32.  The final 128->1 projection is computed as
    w5^T (8,128) @ h4^T (128,tm) so the per-row scalars land lane-dense in a
    (1, tm) output row instead of a (tm, 1) column of masked stores.
    """
    x = x_ref[...]                                            # (tm, D) bf16

    def layer(h_bf16, w_ref, b_ref):
        acc = jnp.dot(h_bf16, w_ref[...],
                      preferred_element_type=jnp.float32)     # MXU, f32 acc
        return jax.nn.sigmoid(acc + b_ref[...])               # f32 VPU/EUP

    h = layer(x, w1_ref, b1_ref)                              # (tm, 128) f32
    h = layer(h.astype(jnp.bfloat16), w2_ref, b2_ref)
    h = layer(h.astype(jnp.bfloat16), w3_ref, b3_ref)
    h = layer(h.astype(jnp.bfloat16), w4_ref, b4_ref)

    # Final projection, transposed-RHS contraction over the feature dim.
    # w5t_ref holds 8 identical copies of w5^T (full sublane tile); row 0 of
    # the (8, tm) result is the lane-dense output row for this tile.
    logits = jax.lax.dot_general(
        w5t_ref[...], h.astype(jnp.bfloat16),
        dimension_numbers=(((1,), (1,)), ((), ())),
        preferred_element_type=jnp.float32)                   # (8, tm)
    o_ref[...] = jax.nn.sigmoid(logits[0:1, :] + b5_ref[...]).astype(o_ref.dtype)


def classification_forward(token_ids, params, *, row_tile=None):
    """token_ids: int32 [B, S]. Returns float32 [B, S] (matches squeeze(-1))."""
    glove = params["glove"]
    B, S = token_ids.shape
    D = glove.shape[1]            # input_size (embedding dim)
    H = params["w1"].shape[1]     # 128

    N = B * S
    if row_tile is None:
        # 512-row tiles hit ~85% of HBM roofline; don't over-pad tiny inputs.
        row_tile = min(512, ((N + 127) // 128) * 128)
    tm = row_tile
    assert tm % 128 == 0, "row_tile must be a multiple of 128"

    num_tiles = pl.cdiv(N, tm)
    n_pad = num_tiles * tm

    # Embedding lookup (gather) kept in plain JAX; read as bf16 to halve the
    # dominant HBM stream.  Padded rows are zeros (discarded in the wrapper).
    emb = jnp.take(glove, token_ids.reshape(-1), axis=0).astype(jnp.bfloat16)
    if n_pad != N:
        emb = jnp.pad(emb, ((0, n_pad - N), (0, 0)))

    # Weights cast to bf16 once; biases stay f32; w5 passed pre-transposed and
    # replicated to a full (8, 128) sublane tile.
    bf16 = lambda a: a.astype(jnp.bfloat16)
    w1, w2, w3, w4 = (bf16(params[k]) for k in ("w1", "w2", "w3", "w4"))
    w5t = jnp.tile(bf16(params["w5"]).T, (8, 1))              # (8, 128)
    b1, b2, b3, b4 = (params[k].reshape(1, -1).astype(jnp.float32)
                      for k in ("b1", "b2", "b3", "b4"))
    b5 = params["b5"].reshape(1, 1).astype(jnp.float32)

    weight_args = [w1, b1, w2, b2, w3, b3, w4, b4, w5t, b5]
    weight_specs = [pl.BlockSpec(a.shape, lambda i: (0, 0)) for a in weight_args]

    flops = 2 * n_pad * (D * H + 3 * H * H + H)
    transcendentals = n_pad * (4 * H + 1)                     # sigmoids
    bytes_accessed = (n_pad * D * 2                           # bf16 embeddings in
                      + n_pad * 4                             # f32 result out
                      + sum(a.size * a.dtype.itemsize for a in weight_args))
    cost = pl.CostEstimate(flops=flops, transcendentals=transcendentals,
                           bytes_accessed=bytes_accessed)

    out = pl.pallas_call(
        _mlp_kernel,
        out_shape=jax.ShapeDtypeStruct((1, n_pad), jnp.float32),
        grid_spec=pltpu.PrefetchScalarGridSpec(
            num_scalar_prefetch=0,
            grid=(num_tiles,),
            in_specs=[pl.BlockSpec((tm, D), lambda i: (i, 0))] + weight_specs,
            out_specs=pl.BlockSpec((1, tm), lambda i: (0, i)),
        ),
        compiler_params=pltpu.CompilerParams(
            dimension_semantics=("parallel",)),
        cost_estimate=cost,
    )(emb, *weight_args)

    return out.reshape(n_pad)[:N].reshape(B, S)               # squeeze(-1)


def init_params(key, vocab_size, input_size, output_size=1, hidden=128):
    """Deterministic synthetic parameters (PyTorch-default-style uniform init)."""
    keys = jax.random.split(key, 11)

    def linear(kw, kb, fan_in, fan_out):
        bound = 1.0 / jnp.sqrt(jnp.float32(fan_in))
        w = jax.random.uniform(kw, (fan_in, fan_out), jnp.float32, -bound, bound)
        b = jax.random.uniform(kb, (fan_out,), jnp.float32, -bound, bound)
        return w, b

    glove = jax.random.normal(keys[0], (vocab_size, input_size), jnp.float32)
    w1, b1 = linear(keys[1], keys[2], input_size, hidden)
    w2, b2 = linear(keys[3], keys[4], hidden, hidden)
    w3, b3 = linear(keys[5], keys[6], hidden, hidden)
    w4, b4 = linear(keys[7], keys[8], hidden, hidden)
    w5, b5 = linear(keys[9], keys[10], hidden, output_size)
    return dict(glove=glove, w1=w1, b1=b1, w2=w2, b2=b2, w3=w3, b3=b3,
                w4=w4, b4=b4, w5=w5, b5=b5)


def _reference_forward(token_ids, p, matmul_dtype=jnp.float32):
    """Plain-JAX reference; matmul_dtype=bf16 mirrors the kernel's precision."""
    x = jnp.take(p["glove"], token_ids.reshape(-1), axis=0).astype(jnp.float32)
    for i in range(1, 6):
        w = p[f"w{i}"].astype(matmul_dtype)
        pre = jnp.dot(x.astype(matmul_dtype), w,
                      preferred_element_type=jnp.float32) + p[f"b{i}"]
        x = jax.nn.sigmoid(pre)
    return x.reshape(token_ids.shape)


if __name__ == "__main__":
    key = jax.random.PRNGKey(0)
    k_param, k_tok = jax.random.split(key)

    VOCAB = 50
    INPUT_SIZE = 32   # embedding dim / linear1 in_features
    B, S = 4, 60      # N = 240 -> padded to 256 with row_tile=128 (2 grid steps)

    params = init_params(k_param, VOCAB, INPUT_SIZE, output_size=1)
    token_ids = jax.random.randint(k_tok, (B, S), 0, VOCAB, dtype=jnp.int32)

    # row_tile=128 exercises the multi-step grid + row padding path.
    y = classification_forward(token_ids, params, row_tile=128)
    y = jax.block_until_ready(y)

    y_ref_bf16 = _reference_forward(token_ids, params, matmul_dtype=jnp.bfloat16)
    y_ref_f32 = _reference_forward(token_ids, params, matmul_dtype=jnp.float32)

    assert y.shape == (B, S)
    assert jnp.allclose(y, y_ref_bf16, atol=2e-3), "mismatch vs bf16-matched reference"
    assert jnp.allclose(y, y_ref_f32, atol=3e-2), "mismatch vs f32 reference"

    print("KERNEL_OK")
</pallas_src>

<mosaic_0001>
module attributes {stable_mosaic.version = 11 : i64} {
  func.func @_mlp_kernel(%arg0: i32, %arg1: memref<128x32xbf16, #tpu.memory_space<vmem>>, %arg2: memref<32x128xbf16, #tpu.memory_space<vmem>>, %arg3: memref<1x128xf32, #tpu.memory_space<vmem>>, %arg4: memref<128x128xbf16, #tpu.memory_space<vmem>>, %arg5: memref<1x128xf32, #tpu.memory_space<vmem>>, %arg6: memref<128x128xbf16, #tpu.memory_space<vmem>>, %arg7: memref<1x128xf32, #tpu.memory_space<vmem>>, %arg8: memref<128x128xbf16, #tpu.memory_space<vmem>>, %arg9: memref<1x128xf32, #tpu.memory_space<vmem>>, %arg10: memref<8x128xbf16, #tpu.memory_space<vmem>>, %arg11: memref<1x1xf32, #tpu.memory_space<vmem>>, %arg12: memref<1x128xf32, #tpu.memory_space<vmem>>) attributes {dimension_semantics = [#tpu.dimension_semantics<parallel>], iteration_bounds = array<i64: 2>, scalar_prefetch = 0 : i64, scratch_operands = 0 : i64, tpu.core_type = #tpu.core_type<tc>, window_params = [{transform_indices = @transform_0, window_bounds = array<i64: 128, 32>}, {pipeline_mode = #tpu.pipeline_mode<synchronous>, transform_indices = @transform_1, window_bounds = array<i64: 32, 128>}, {pipeline_mode = #tpu.pipeline_mode<synchronous>, transform_indices = @transform_2, window_bounds = array<i64: 1, 128>}, {pipeline_mode = #tpu.pipeline_mode<synchronous>, transform_indices = @transform_3, window_bounds = array<i64: 128, 128>}, {pipeline_mode = #tpu.pipeline_mode<synchronous>, transform_indices = @transform_4, window_bounds = array<i64: 1, 128>}, {pipeline_mode = #tpu.pipeline_mode<synchronous>, transform_indices = @transform_5, window_bounds = array<i64: 128, 128>}, {pipeline_mode = #tpu.pipeline_mode<synchronous>, transform_indices = @transform_6, window_bounds = array<i64: 1, 128>}, {pipeline_mode = #tpu.pipeline_mode<synchronous>, transform_indices = @transform_7, window_bounds = array<i64: 128, 128>}, {pipeline_mode = #tpu.pipeline_mode<synchronous>, transform_indices = @transform_8, window_bounds = array<i64: 1, 128>}, {pipeline_mode = #tpu.pipeline_mode<synchronous>, transform_indices = @transform_9, window_bounds = array<i64: 8, 128>}, {pipeline_mode = #tpu.pipeline_mode<synchronous>, transform_indices = @transform_10, window_bounds = array<i64: 1, 1>}, {transform_indices = @transform_11, window_bounds = array<i64: 1, 128>}]} {
    %c0 = arith.constant 0 : index
    %c0_0 = arith.constant 0 : index
    %0 = vector.load %arg1[%c0, %c0_0] : memref<128x32xbf16, #tpu.memory_space<vmem>>, vector<128x32xbf16>
    %c0_1 = arith.constant 0 : index
    %c0_2 = arith.constant 0 : index
    %1 = vector.load %arg2[%c0_1, %c0_2] : memref<32x128xbf16, #tpu.memory_space<vmem>>, vector<32x128xbf16>
    %cst = arith.constant dense<0.000000e+00> : vector<128x128xf32>
    %2 = tpu.matmul %0, %1, %cst {dimension_numbers = #tpu.dot_dimension_numbers<[1], [0], [0], [1], [0, 0, 1, 1], [], []>} : vector<128x32xbf16>, vector<32x128xbf16>, vector<128x128xf32> -> vector<128x128xf32>
    %c0_3 = arith.constant 0 : index
    %c0_4 = arith.constant 0 : index
    %3 = vector.load %arg3[%c0_3, %c0_4] : memref<1x128xf32, #tpu.memory_space<vmem>>, vector<1x128xf32>
    %4 = vector.broadcast %3 : vector<1x128xf32> to vector<128x128xf32>
    %5 = arith.addf %2, %4 : vector<128x128xf32>
    %6 = arith.negf %5 : vector<128x128xf32>
    %7 = math.exp %6 : vector<128x128xf32>
    %cst_5 = arith.constant 1.000000e+00 : f32
    %8 = vector.broadcast %cst_5 : f32 to vector<128x128xf32>
    %9 = arith.addf %8, %7 : vector<128x128xf32>
    %10 = arith.divf %8, %9 : vector<128x128xf32>
    %11 = arith.truncf %10 : vector<128x128xf32> to vector<128x128xbf16>
    %c0_6 = arith.constant 0 : index
    %c0_7 = arith.constant 0 : index
    %12 = vector.load %arg4[%c0_6, %c0_7] : memref<128x128xbf16, #tpu.memory_space<vmem>>, vector<128x128xbf16>
    %cst_8 = arith.constant dense<0.000000e+00> : vector<128x128xf32>
    %13 = tpu.matmul %11, %12, %cst_8 {dimension_numbers = #tpu.dot_dimension_numbers<[1], [0], [0], [1], [0, 0, 1, 1], [], []>} : vector<128x128xbf16>, vector<128x128xbf16>, vector<128x128xf32> -> vector<128x128xf32>
    %c0_9 = arith.constant 0 : index
    %c0_10 = arith.constant 0 : index
    %14 = vector.load %arg5[%c0_9, %c0_10] : memref<1x128xf32, #tpu.memory_space<vmem>>, vector<1x128xf32>
    %15 = vector.broadcast %14 : vector<1x128xf32> to vector<128x128xf32>
    %16 = arith.addf %13, %15 : vector<128x128xf32>
    %17 = arith.negf %16 : vector<128x128xf32>
    %18 = math.exp %17 : vector<128x128xf32>
    %cst_11 = arith.constant 1.000000e+00 : f32
    %19 = vector.broadcast %cst_11 : f32 to vector<128x128xf32>
    %20 = arith.addf %19, %18 : vector<128x128xf32>
    %21 = arith.divf %19, %20 : vector<128x128xf32>
    %22 = arith.truncf %21 : vector<128x128xf32> to vector<128x128xbf16>
    %c0_12 = arith.constant 0 : index
    %c0_13 = arith.constant 0 : index
    %23 = vector.load %arg6[%c0_12, %c0_13] : memref<128x128xbf16, #tpu.memory_space<vmem>>, vector<128x128xbf16>
    %cst_14 = arith.constant dense<0.000000e+00> : vector<128x128xf32>
    %24 = tpu.matmul %22, %23, %cst_14 {dimension_numbers = #tpu.dot_dimension_numbers<[1], [0], [0], [1], [0, 0, 1, 1], [], []>} : vector<128x128xbf16>, vector<128x128xbf16>, vector<128x128xf32> -> vector<128x128xf32>
    %c0_15 = arith.constant 0 : index
    %c0_16 = arith.constant 0 : index
    %25 = vector.load %arg7[%c0_15, %c0_16] : memref<1x128xf32, #tpu.memory_space<vmem>>, vector<1x128xf32>
    %26 = vector.broadcast %25 : vector<1x128xf32> to vector<128x128xf32>
    %27 = arith.addf %24, %26 : vector<128x128xf32>
    %28 = arith.negf %27 : vector<128x128xf32>
    %29 = math.exp %28 : vector<128x128xf32>
    %cst_17 = arith.constant 1.000000e+00 : f32
    %30 = vector.broadcast %cst_17 : f32 to vector<128x128xf32>
    %31 = arith.addf %30, %29 : vector<128x128xf32>
    %32 = arith.divf %30, %31 : vector<128x128xf32>
    %33 = arith.truncf %32 : vector<128x128xf32> to vector<128x128xbf16>
    %c0_18 = arith.constant 0 : index
    %c0_19 = arith.constant 0 : index
    %34 = vector.load %arg8[%c0_18, %c0_19] : memref<128x128xbf16, #tpu.memory_space<vmem>>, vector<128x128xbf16>
    %cst_20 = arith.constant dense<0.000000e+00> : vector<128x128xf32>
    %35 = tpu.matmul %33, %34, %cst_20 {dimension_numbers = #tpu.dot_dimension_numbers<[1], [0], [0], [1], [0, 0, 1, 1], [], []>} : vector<128x128xbf16>, vector<128x128xbf16>, vector<128x128xf32> -> vector<128x128xf32>
    %c0_21 = arith.constant 0 : index
    %c0_22 = arith.constant 0 : index
    %36 = vector.load %arg9[%c0_21, %c0_22] : memref<1x128xf32, #tpu.memory_space<vmem>>, vector<1x128xf32>
    %37 = vector.broadcast %36 : vector<1x128xf32> to vector<128x128xf32>
    %38 = arith.addf %35, %37 : vector<128x128xf32>
    %39 = arith.negf %38 : vector<128x128xf32>
    %40 = math.exp %39 : vector<128x128xf32>
    %cst_23 = arith.constant 1.000000e+00 : f32
    %41 = vector.broadcast %cst_23 : f32 to vector<128x128xf32>
    %42 = arith.addf %41, %40 : vector<128x128xf32>
    %43 = arith.divf %41, %42 : vector<128x128xf32>
    %c0_24 = arith.constant 0 : index
    %c0_25 = arith.constant 0 : index
    %44 = vector.load %arg10[%c0_24, %c0_25] : memref<8x128xbf16, #tpu.memory_space<vmem>>, vector<8x128xbf16>
    %45 = arith.truncf %43 : vector<128x128xf32> to vector<128x128xbf16>
    %cst_26 = arith.constant dense<0.000000e+00> : vector<8x128xf32>
    %46 = tpu.matmul %44, %45, %cst_26 {dimension_numbers = #tpu.dot_dimension_numbers<[1], [1], [0], [0], [0, 0, 1, 0], [], []>} : vector<8x128xbf16>, vector<128x128xbf16>, vector<8x128xf32> -> vector<8x128xf32>
    %47 = vector.extract_strided_slice %46 {offsets = [0, 0], sizes = [1, 128], strides = [1, 1]} : vector<8x128xf32> to vector<1x128xf32>
    %c0_27 = arith.constant 0 : index
    %c0_28 = arith.constant 0 : index
    %48 = vector.load %arg11[%c0_27, %c0_28] : memref<1x1xf32, #tpu.memory_space<vmem>>, vector<1x1xf32>
    %49 = vector.broadcast %48 : vector<1x1xf32> to vector<1x128xf32>
    %50 = arith.addf %47, %49 : vector<1x128xf32>
    %51 = arith.negf %50 : vector<1x128xf32>
    %52 = math.exp %51 : vector<1x128xf32>
    %cst_29 = arith.constant 1.000000e+00 : f32
    %53 = vector.broadcast %cst_29 : f32 to vector<1x128xf32>
    %54 = arith.addf %53, %52 : vector<1x128xf32>
    %55 = arith.divf %53, %54 : vector<1x128xf32>
    %c0_30 = arith.constant 0 : index
    %c0_31 = arith.constant 0 : index
    %56 = vector.load %arg12[%c0_30, %c0_31] : memref<1x128xf32, #tpu.memory_space<vmem>>, vector<1x128xf32>
    tpu.vector_store %arg12[%c0_30, %c0_31], %55 {strides = array<i32>} : memref<1x128xf32, #tpu.memory_space<vmem>>, vector<1x128xf32>,
    return
  }
  func.func @transform_0(%arg0: i32) -> (i32, i32) {
    %c0_i32 = arith.constant 0 : i32
    %c0_i32_0 = arith.constant 0 : i32
    return %arg0, %c0_i32 : i32, i32
  }
  func.func @transform_1(%arg0: i32) -> (i32, i32) {
    %c0_i32 = arith.constant 0 : i32
    %c0_i32_0 = arith.constant 0 : i32
    %c0_i32_1 = arith.constant 0 : i32
    return %c0_i32, %c0_i32_0 : i32, i32
  }
  func.func @transform_2(%arg0: i32) -> (i32, i32) {
    %c0_i32 = arith.constant 0 : i32
    %c0_i32_0 = arith.constant 0 : i32
    %c0_i32_1 = arith.constant 0 : i32
    return %c0_i32, %c0_i32_0 : i32, i32
  }
  func.func @transform_3(%arg0: i32) -> (i32, i32) {
    %c0_i32 = arith.constant 0 : i32
    %c0_i32_0 = arith.constant 0 : i32
    %c0_i32_1 = arith.constant 0 : i32
    return %c0_i32, %c0_i32_0 : i32, i32
  }
  func.func @transform_4(%arg0: i32) -> (i32, i32) {
    %c0_i32 = arith.constant 0 : i32
    %c0_i32_0 = arith.constant 0 : i32
    %c0_i32_1 = arith.constant 0 : i32
    return %c0_i32, %c0_i32_0 : i32, i32
  }
  func.func @transform_5(%arg0: i32) -> (i32, i32) {
    %c0_i32 = arith.constant 0 : i32
    %c0_i32_0 = arith.constant 0 : i32
    %c0_i32_1 = arith.constant 0 : i32
    return %c0_i32, %c0_i32_0 : i32, i32
  }
  func.func @transform_6(%arg0: i32) -> (i32, i32) {
    %c0_i32 = arith.constant 0 : i32
    %c0_i32_0 = arith.constant 0 : i32
    %c0_i32_1 = arith.constant 0 : i32
    return %c0_i32, %c0_i32_0 : i32, i32
  }
  func.func @transform_7(%arg0: i32) -> (i32, i32) {
    %c0_i32 = arith.constant 0 : i32
    %c0_i32_0 = arith.constant 0 : i32
    %c0_i32_1 = arith.constant 0 : i32
    return %c0_i32, %c0_i32_0 : i32, i32
  }
  func.func @transform_8(%arg0: i32) -> (i32, i32) {
    %c0_i32 = arith.constant 0 : i32
    %c0_i32_0 = arith.constant 0 : i32
    %c0_i32_1 = arith.constant 0 : i32
    return %c0_i32, %c0_i32_0 : i32, i32
  }
  func.func @transform_9(%arg0: i32) -> (i32, i32) {
    %c0_i32 = arith.constant 0 : i32
    %c0_i32_0 = arith.constant 0 : i32
    %c0_i32_1 = arith.constant 0 : i32
    return %c0_i32, %c0_i32_0 : i32, i32
  }
  func.func @transform_10(%arg0: i32) -> (i32, i32) {
    %c0_i32 = arith.constant 0 : i32
    %c0_i32_0 = arith.constant 0 : i32
    %c0_i32_1 = arith.constant 0 : i32
    return %c0_i32, %c0_i32_0 : i32, i32
  }
  func.func @transform_11(%arg0: i32) -> (i32, i32) {
    %c0_i32 = arith.constant 0 : i32
    %c0_i32_0 = arith.constant 0 : i32
    return %c0_i32, %arg0 : i32, i32
  }
}

</mosaic_0001>

<llo_original>
// kernel: tpu_custom_call.1
$region0: #{tpu_custom_call.1}
  #allocation0 [shape = 'u32[]', space=smem, size = 0x4, offset = 0x4, fixed_abs, tag = 'smem constant byte address 0x4 - core index']
  #allocation1 [shape = 'u32[144,128]{1,0:T(1,128)}', space=vmem, size = 0x12000, scoped, tag = 'internal scratch']
  #allocation2 [shape = 'f32[1,1]{1,0:T(1,128)S(1)}', space=vmem, size = 0x200, scoped, tag = 'scoped memory for tpu_custom_call.1']
  %s0 = inlined_call_operand.vmem [shape: bf16[256,32], index: 0, kind: input, shape index: {}]
  %s1 = inlined_call_operand.vmem [shape: bf16[32,128], index: 1, kind: input, shape index: {}]
  %s2 = inlined_call_operand.vmem [shape: f32[1,128], index: 2, kind: input, shape index: {}]
  %s3 = inlined_call_operand.vmem [shape: bf16[128,128], index: 3, kind: input, shape index: {}]
  %s4 = inlined_call_operand.vmem [shape: f32[1,128], index: 4, kind: input, shape index: {}]
  %s5 = inlined_call_operand.vmem [shape: bf16[128,128], index: 5, kind: input, shape index: {}]
  %s6 = inlined_call_operand.vmem [shape: f32[1,128], index: 6, kind: input, shape index: {}]
  %s7 = inlined_call_operand.hbm [shape: bf16[128,128], index: 7, kind: input, shape index: {}]
  %s8 = inlined_call_operand.vmem [shape: f32[1,128], index: 8, kind: input, shape index: {}]
  %s9 = inlined_call_operand.vmem [shape: bf16[8,128], index: 9, kind: input, shape index: {}]
  %s10 = inlined_call_operand.<no memory space> [shape: f32[1,1], index: 10, kind: input, shape index: {}]
  %s11 = inlined_call_operand.hbm [shape: f32[1,256], index: 11, kind: output, shape index: {}]
  %s12 = sld [smem:[#allocation0]]
  $region81: #{tpu_custom_call.1} parent=0
    _
  %s14 = ssub.s32 1, %s12
  %s15 = scalar_select 0, %s14, %s12
  %v16 = vstv %s10
  %17 = vst [vmem:[#allocation2] sm:$0x1] %v16
  $region1: #{tpu_custom_call.1} parent=0
    #allocation3 [shape = 'u8[32768]{0}', space=vmem, size = 0x8000, scoped, tag = 'input window, operand 7, single buffered']
    #allocation4 [shape = 's32[2]{0}', space=sflag, size = 0x8, scoped, tag = 'scoped memory for tpu_custom_call.1']
    #allocation5 [shape = 's32[2]{0}', space=sflag, size = 0x8, scoped, tag = 'scoped memory for tpu_custom_call.1']
    #allocation6 [shape = 'u8[1024]{0}', space=vmem, size = 0x400, scoped, tag = 'output window, operand 0']
    %18 = vsyncpa [#allocation4], 0
    %19 = vsyncpa [#allocation5], 0
    %s20 = scalar_lea.sflag [#allocation5], 1
    %21 = vsyncpa %s20, 0
    loop: start=0, step=1, limit=4
    $region2: #{tpu_custom_call.1} parent=1 // loop_pre_header
      _
    $region3: #{tpu_custom_call.1} parent=1 // loop_header
      %s23 = sphi 0, %s27
      %p24 = scmp.ge.s32.totalorder %s23, 4
      %s33 = sphi 0, %s35
      %s36 = sphi 0, %s33
      %s37 = sphi 0, %s36
      %s53 = sphi 0, %s37
      %s57 = sphi 0, %s57
      %s59 = sphi 0, %s57
      %s60 = sphi 0, %s59
      %s74 = sphi 0, %s60
      %s78 = sphi 0, %s78
      %s80 = sphi 0, %s78
      %s81 = sphi 0, %s80
      %s95 = sphi 0, %s81
      %s99 = sphi 0, %s99
      %s101 = sphi 0, %s99
      %s102 = sphi 0, %s101
      %s116 = sphi 0, %s102
      %s120 = sphi 0, %s120
      %s122 = sphi 0, %s120
      %s123 = sphi 0, %s122
      %s137 = sphi 0, %s123
      %s141 = sphi 0, %s141
      %s143 = sphi 0, %s141
      %s144 = sphi 0, %s143
      %s158 = sphi 0, %s144
      %s162 = sphi 0, %s162
      %s164 = sphi 0, %s162
      %s165 = sphi 0, %s164
      %s179 = sphi 0, %s165
      %s183 = sphi 0, %s183
      %s185 = sphi 0, %s183
      %s186 = sphi 0, %s185
      %s200 = sphi 0, %s186
      %s204 = sphi 0, %s204
      %s206 = sphi 0, %s204
      %s207 = sphi 0, %s206
      %s221 = sphi 0, %s207
      %s225 = sphi 0, %s225
      %s227 = sphi 0, %s225
      %s228 = sphi 0, %s227
      %s242 = sphi 0, %s228
      %s246 = sphi 0, %s246
      %s248 = sphi 0, %s246
      %s249 = sphi 0, %s248
      %s263 = sphi 0, %s249
      %s269 = sphi 0, %s271
      %s272 = sphi 0, %s269
      %s273 = sphi 0, %s272
      %s289 = sphi 0, %s273
    $region4: #{tpu_custom_call.1} parent=1 // loop_header_branch
      %26 = sbr.rel (%p24) target = $region8
    $region5: #{tpu_custom_call.1} parent=1 // loop_body
      %s28 = ssub.s32 %s23, 1
      %s29 = ssub.s32 %s23, 2
      %s30 = sadd.s32 %s23, 1
      %s31 = ssub.s32 %s23, %s30
      %p32 = scmp.eq.s32.totalorder %s31, 0
      %s34 = sadd.s32 %s33, 1
      %s35 = scalar_select %p32, %s33, %s34
      %p38 = pneg %p32
      %p39 = scmp.eq.s32.totalorder %s23, 1
      %p40 = por %p38, %p39
      %p41 = scmp.ne.s32.totalorder %s33, %s36
      %p42 = scmp.eq.s32.totalorder %s23, 0
      %p43 = por %p41, %p42
      %p44 = scmp.ne.s32.totalorder %s33, %s36
      %p45 = scmp.eq.s32.totalorder %s28, 1
      %p46 = por %p44, %p45
      %p47 = scmp.ne.s32.totalorder %s36, %s37
      %p48 = scmp.eq.s32.totalorder %s28, 0
      %p49 = por %p47, %p48
      %p50 = scmp.ne.s32.totalorder %s36, %s37
      %p51 = scmp.eq.s32.totalorder %s29, 1
      %p52 = por %p50, %p51
      %p54 = scmp.ne.s32.totalorder %s37, %s53
      %p55 = scmp.eq.s32.totalorder %s29, 0
      %p56 = por %p54, %p55
      %s58 = sadd.s32 %s57, 1
      %p61 = scmp.eq.s32.totalorder %s23, 1
      %p62 = scmp.ne.s32.totalorder %s57, %s59
      %p63 = scmp.eq.s32.totalorder %s23, 0
      %p64 = por %p62, %p63
      %p65 = scmp.ne.s32.totalorder %s57, %s59
      %p66 = scmp.eq.s32.totalorder %s28, 1
      %p67 = por %p65, %p66
      %p68 = scmp.ne.s32.totalorder %s59, %s60
      %p69 = scmp.eq.s32.totalorder %s28, 0
      %p70 = por %p68, %p69
      %p71 = scmp.ne.s32.totalorder %s59, %s60
      %p72 = scmp.eq.s32.totalorder %s29, 1
      %p73 = por %p71, %p72
      %p75 = scmp.ne.s32.totalorder %s60, %s74
      %p76 = scmp.eq.s32.totalorder %s29, 0
      %p77 = por %p75, %p76
      %s79 = sadd.s32 %s78, 1
      %p82 = scmp.eq.s32.totalorder %s23, 1
      %p83 = scmp.ne.s32.totalorder %s78, %s80
      %p84 = scmp.eq.s32.totalorder %s23, 0
      %p85 = por %p83, %p84
      %p86 = scmp.ne.s32.totalorder %s78, %s80
      %p87 = scmp.eq.s32.totalorder %s28, 1
      %p88 = por %p86, %p87
      %p89 = scmp.ne.s32.totalorder %s80, %s81
      %p90 = scmp.eq.s32.totalorder %s28, 0
      %p91 = por %p89, %p90
      %p92 = scmp.ne.s32.totalorder %s80, %s81
      %p93 = scmp.eq.s32.totalorder %s29, 1
      %p94 = por %p92, %p93
      %p96 = scmp.ne.s32.totalorder %s81, %s95
      %p97 = scmp.eq.s32.totalorder %s29, 0
      %p98 = por %p96, %p97
      %s100 = sadd.s32 %s99, 1
      %p103 = scmp.eq.s32.totalorder %s23, 1
      %p104 = scmp.ne.s32.totalorder %s99, %s101
      %p105 = scmp.eq.s32.totalorder %s23, 0
      %p106 = por %p104, %p105
      %p107 = scmp.ne.s32.totalorder %s99, %s101
      %p108 = scmp.eq.s32.totalorder %s28, 1
      %p109 = por %p107, %p108
      %p110 = scmp.ne.s32.totalorder %s101, %s102
      %p111 = scmp.eq.s32.totalorder %s28, 0
      %p112 = por %p110, %p111
      %p113 = scmp.ne.s32.totalorder %s101, %s102
      %p114 = scmp.eq.s32.totalorder %s29, 1
      %p115 = por %p113, %p114
      %p117 = scmp.ne.s32.totalorder %s102, %s116
      %p118 = scmp.eq.s32.totalorder %s29, 0
      %p119 = por %p117, %p118
      %s121 = sadd.s32 %s120, 1
      %p124 = scmp.eq.s32.totalorder %s23, 1
      %p125 = scmp.ne.s32.totalorder %s120, %s122
      %p126 = scmp.eq.s32.totalorder %s23, 0
      %p127 = por %p125, %p126
      %p128 = scmp.ne.s32.totalorder %s120, %s122
      %p129 = scmp.eq.s32.totalorder %s28, 1
      %p130 = por %p128, %p129
      %p131 = scmp.ne.s32.totalorder %s122, %s123
      %p132 = scmp.eq.s32.totalorder %s28, 0
      %p133 = por %p131, %p132
      %p134 = scmp.ne.s32.totalorder %s122, %s123
      %p135 = scmp.eq.s32.totalorder %s29, 1
      %p136 = por %p134, %p135
      %p138 = scmp.ne.s32.totalorder %s123, %s137
      %p139 = scmp.eq.s32.totalorder %s29, 0
      %p140 = por %p138, %p139
      %s142 = sadd.s32 %s141, 1
      %p145 = scmp.eq.s32.totalorder %s23, 1
      %p146 = scmp.ne.s32.totalorder %s141, %s143
      %p147 = scmp.eq.s32.totalorder %s23, 0
      %p148 = por %p146, %p147
      %p149 = scmp.ne.s32.totalorder %s141, %s143
      %p150 = scmp.eq.s32.totalorder %s28, 1
      %p151 = por %p149, %p150
      %p152 = scmp.ne.s32.totalorder %s143, %s144
      %p153 = scmp.eq.s32.totalorder %s28, 0
      %p154 = por %p152, %p153
      %p155 = scmp.ne.s32.totalorder %s143, %s144
      %p156 = scmp.eq.s32.totalorder %s29, 1
      %p157 = por %p155, %p156
      %p159 = scmp.ne.s32.totalorder %s144, %s158
      %p160 = scmp.eq.s32.totalorder %s29, 0
      %p161 = por %p159, %p160
      %s163 = sadd.s32 %s162, 1
      %p166 = scmp.eq.s32.totalorder %s23, 1
      %p167 = scmp.ne.s32.totalorder %s162, %s164
      %p168 = scmp.eq.s32.totalorder %s23, 0
      %p169 = por %p167, %p168
      %p170 = scmp.ne.s32.totalorder %s162, %s164
      %p171 = scmp.eq.s32.totalorder %s28, 1
      %p172 = por %p170, %p171
      %p173 = scmp.ne.s32.totalorder %s164, %s165
      %p174 = scmp.eq.s32.totalorder %s28, 0
      %p175 = por %p173, %p174
      %p176 = scmp.ne.s32.totalorder %s164, %s165
      %p177 = scmp.eq.s32.totalorder %s29, 1
      %p178 = por %p176, %p177
      %p180 = scmp.ne.s32.totalorder %s165, %s179
      %p181 = scmp.eq.s32.totalorder %s29, 0
      %p182 = por %p180, %p181
      %s184 = sadd.s32 %s183, 1
      %p187 = scmp.eq.s32.totalorder %s23, 1
      %p188 = scmp.ne.s32.totalorder %s183, %s185
      %p189 = scmp.eq.s32.totalorder %s23, 0
      %p190 = por %p188, %p189
      %p191 = scmp.ne.s32.totalorder %s183, %s185
      %p192 = scmp.eq.s32.totalorder %s28, 1
      %p193 = por %p191, %p192
      %p194 = scmp.ne.s32.totalorder %s185, %s186
      %p195 = scmp.eq.s32.totalorder %s28, 0
      %p196 = por %p194, %p195
      %p197 = scmp.ne.s32.totalorder %s185, %s186
      %p198 = scmp.eq.s32.totalorder %s29, 1
      %p199 = por %p197, %p198
      %p201 = scmp.ne.s32.totalorder %s186, %s200
      %p202 = scmp.eq.s32.totalorder %s29, 0
      %p203 = por %p201, %p202
      %s205 = sadd.s32 %s204, 1
      %p208 = scmp.eq.s32.totalorder %s23, 1
      %p209 = scmp.ne.s32.totalorder %s204, %s206
      %p210 = scmp.eq.s32.totalorder %s23, 0
      %p211 = por %p209, %p210
      %p212 = scmp.ne.s32.totalorder %s204, %s206
      %p213 = scmp.eq.s32.totalorder %s28, 1
      %p214 = por %p212, %p213
      %p215 = scmp.ne.s32.totalorder %s206, %s207
      %p216 = scmp.eq.s32.totalorder %s28, 0
      %p217 = por %p215, %p216
      %p218 = scmp.ne.s32.totalorder %s206, %s207
      %p219 = scmp.eq.s32.totalorder %s29, 1
      %p220 = por %p218, %p219
      %p222 = scmp.ne.s32.totalorder %s207, %s221
      %p223 = scmp.eq.s32.totalorder %s29, 0
      %p224 = por %p222, %p223
      %s226 = sadd.s32 %s225, 1
      %p229 = scmp.eq.s32.totalorder %s23, 1
      %p230 = scmp.ne.s32.totalorder %s225, %s227
      %p231 = scmp.eq.s32.totalorder %s23, 0
      %p232 = por %p230, %p231
      %p233 = scmp.ne.s32.totalorder %s225, %s227
      %p234 = scmp.eq.s32.totalorder %s28, 1
      %p235 = por %p233, %p234
      %p236 = scmp.ne.s32.totalorder %s227, %s228
      %p237 = scmp.eq.s32.totalorder %s28, 0
      %p238 = por %p236, %p237
      %p239 = scmp.ne.s32.totalorder %s227, %s228
      %p240 = scmp.eq.s32.totalorder %s29, 1
      %p241 = por %p239, %p240
      %p243 = scmp.ne.s32.totalorder %s228, %s242
      %p244 = scmp.eq.s32.totalorder %s29, 0
      %p245 = por %p243, %p244
      %s247 = sadd.s32 %s246, 1
      %p250 = scmp.eq.s32.totalorder %s23, 1
      %p251 = scmp.ne.s32.totalorder %s246, %s248
      %p252 = scmp.eq.s32.totalorder %s23, 0
      %p253 = por %p251, %p252
      %p254 = scmp.ne.s32.totalorder %s246, %s248
      %p255 = scmp.eq.s32.totalorder %s28, 1
      %p256 = por %p254, %p255
      %p257 = scmp.ne.s32.totalorder %s248, %s249
      %p258 = scmp.eq.s32.totalorder %s28, 0
      %p259 = por %p257, %p258
      %p260 = scmp.ne.s32.totalorder %s248, %s249
      %p261 = scmp.eq.s32.totalorder %s29, 1
      %p262 = por %p260, %p261
      %p264 = scmp.ne.s32.totalorder %s249, %s263
      %p265 = scmp.eq.s32.totalorder %s29, 0
      %p266 = por %p264, %p265
      %s267 = ssub.s32 %s23, %s30
      %p268 = scmp.eq.s32.totalorder %s267, 0
      %s270 = sadd.s32 %s269, 1
      %s271 = scalar_select %p268, %s269, %s270
      %p274 = pneg %p268
      %p275 = scmp.eq.s32.totalorder %s23, 1
      %p276 = por %p274, %p275
      %p277 = scmp.ne.s32.totalorder %s269, %s272
      %p278 = scmp.eq.s32.totalorder %s23, 0
      %p279 = por %p277, %p278
      %p280 = scmp.ne.s32.totalorder %s269, %s272
      %p281 = scmp.eq.s32.totalorder %s28, 1
      %p282 = por %p280, %p281
      %p283 = scmp.ne.s32.totalorder %s272, %s273
      %p284 = scmp.eq.s32.totalorder %s28, 0
      %p285 = por %p283, %p284
      %p286 = scmp.ne.s32.totalorder %s272, %s273
      %p287 = scmp.eq.s32.totalorder %s29, 1
      %p288 = por %p286, %p287
      %p290 = scmp.ne.s32.totalorder %s273, %s289
      %p291 = scmp.eq.s32.totalorder %s29, 0
      %p292 = por %p290, %p291
      %p293 = scmp.le.s32.totalorder 1, %s23
      %p294 = scmp.lt.s32.totalorder %s23, 3
      %p295 = pnand %p293, %p294
      %p296 = pneg %p295
      // Predicated region
      $region9: #{tpu_custom_call.1} parent=5 // pred_check
        _
      $region10: #{tpu_custom_call.1} parent=5 // pred_check_branch
        %298 = sbr.rel (%p295) target = $region12
      $region11: #{tpu_custom_call.1} parent=5 // pred_region
        %s299 = ssub.s32 %s23, 1
        // Predicated region
        $region13: #{tpu_custom_call.1} parent=11 // pred_check
          %p300 = pneg %p70
        $region14: #{tpu_custom_call.1} parent=11 // pred_check_branch
          %302 = sbr.rel (%p300) target = $region16
        $region15: #{tpu_custom_call.1} parent=11 // pred_region
          _
        $region16: #{tpu_custom_call.1} parent=11 // pred_fallthru
          _
        // Predicated region
        $region17: #{tpu_custom_call.1} parent=11 // pred_check
          %p303 = pneg %p91
        $region18: #{tpu_custom_call.1} parent=11 // pred_check_branch
          %305 = sbr.rel (%p303) target = $region20
        $region19: #{tpu_custom_call.1} parent=11 // pred_region
          _
        $region20: #{tpu_custom_call.1} parent=11 // pred_fallthru
          _
        // Predicated region
        $region21: #{tpu_custom_call.1} parent=11 // pred_check
          %p306 = pneg %p112
        $region22: #{tpu_custom_call.1} parent=11 // pred_check_branch
          %308 = sbr.rel (%p306) target = $region24
        $region23: #{tpu_custom_call.1} parent=11 // pred_region
          _
        $region24: #{tpu_custom_call.1} parent=11 // pred_fallthru
          _
        // Predicated region
        $region25: #{tpu_custom_call.1} parent=11 // pred_check
          %p309 = pneg %p133
        $region26: #{tpu_custom_call.1} parent=11 // pred_check_branch
          %311 = sbr.rel (%p309) target = $region28
        $region27: #{tpu_custom_call.1} parent=11 // pred_region
          _
        $region28: #{tpu_custom_call.1} parent=11 // pred_fallthru
          _
        // Predicated region
        $region29: #{tpu_custom_call.1} parent=11 // pred_check
          %p312 = pneg %p154
        $region30: #{tpu_custom_call.1} parent=11 // pred_check_branch
          %314 = sbr.rel (%p312) target = $region32
        $region31: #{tpu_custom_call.1} parent=11 // pred_region
          _
        $region32: #{tpu_custom_call.1} parent=11 // pred_fallthru
          _
        // Predicated region
        $region33: #{tpu_custom_call.1} parent=11 // pred_check
          %p315 = pneg %p175
        $region34: #{tpu_custom_call.1} parent=11 // pred_check_branch
          %317 = sbr.rel (%p315) target = $region36
        $region35: #{tpu_custom_call.1} parent=11 // pred_region
          _
        $region36: #{tpu_custom_call.1} parent=11 // pred_fallthru
          _
        // Predicated region
        $region37: #{tpu_custom_call.1} parent=11 // pred_check
          %p318 = pneg %p196
        $region38: #{tpu_custom_call.1} parent=11 // pred_check_branch
          %320 = sbr.rel (%p318) target = $region40
        $region39: #{tpu_custom_call.1} parent=11 // pred_region
          %s322 = ssub.s32 1024, 1024
          %323 = vsyncadd [#allocation4], %s322
          %s324 = sshll.u32 [#allocation3], 4
          %s325 = int_to_ptr.vmem [resolvable:$true] %s324
          %330 = dma.hbm_to_vmem [thread:$0]  %s7, 1024, %s325, [#allocation4], 64, 64, 4
        $region40: #{tpu_custom_call.1} parent=11 // pred_fallthru
          _
        // Predicated region
        $region41: #{tpu_custom_call.1} parent=11 // pred_check
          %p331 = pneg %p217
        $region42: #{tpu_custom_call.1} parent=11 // pred_check_branch
          %333 = sbr.rel (%p331) target = $region44
        $region43: #{tpu_custom_call.1} parent=11 // pred_region
          _
        $region44: #{tpu_custom_call.1} parent=11 // pred_fallthru
          _
        // Predicated region
        $region45: #{tpu_custom_call.1} parent=11 // pred_check
          %p334 = pneg %p238
        $region46: #{tpu_custom_call.1} parent=11 // pred_check_branch
          %336 = sbr.rel (%p334) target = $region48
        $region47: #{tpu_custom_call.1} parent=11 // pred_region
          _
        $region48: #{tpu_custom_call.1} parent=11 // pred_fallthru
          _
        // Predicated region
        $region49: #{tpu_custom_call.1} parent=11 // pred_check
          %p337 = pneg %p259
        $region50: #{tpu_custom_call.1} parent=11 // pred_check_branch
          %339 = sbr.rel (%p337) target = $region52
        $region51: #{tpu_custom_call.1} parent=11 // pred_region
          _
        $region52: #{tpu_custom_call.1} parent=11 // pred_fallthru
          _
      $region12: #{tpu_custom_call.1} parent=5 // pred_fallthru
        _
      %p340 = scmp.lt.s32.totalorder %s23, 2
      // Predicated region
      $region53: #{tpu_custom_call.1} parent=5 // pred_check
        %p341 = pneg %p340
      $region54: #{tpu_custom_call.1} parent=5 // pred_check_branch
        %343 = sbr.rel (%p341) target = $region56
      $region55: #{tpu_custom_call.1} parent=5 // pred_region
        // Predicated region
        $region57: #{tpu_custom_call.1} parent=55 // pred_check
          %p344 = pneg %p43
        $region58: #{tpu_custom_call.1} parent=55 // pred_check_branch
          %346 = sbr.rel (%p344) target = $region60
        $region59: #{tpu_custom_call.1} parent=55 // pred_region
          %s347 = smul.u32 16, %s23
          %p348 = scmp.lt.s32.totalorder %s347, 31
          %s349 = scalar_select %p348, %s347, 31
          %s350 = smul.addr %s349, 4
          %s351 = scalar_lea.vmem %s0, %s350
          %s352 = smul.u32 16, %s23
        $region60: #{tpu_custom_call.1} parent=55 // pred_fallthru
          _
      $region56: #{tpu_custom_call.1} parent=5 // pred_fallthru
        _
      %p353 = scmp.le.s32.totalorder 1, %s23
      %p354 = scmp.lt.s32.totalorder %s23, 3
      %p355 = pnand %p353, %p354
      %p356 = pneg %p355
      // Predicated region
      $region61: #{tpu_custom_call.1} parent=5 // pred_check
        _
      $region62: #{tpu_custom_call.1} parent=5 // pred_check_branch
        %358 = sbr.rel (%p355) target = $region64
      $region63: #{tpu_custom_call.1} parent=5 // pred_region
        %s359 = ssub.s32 %s23, 1
        // Predicated region
        $region65: #{tpu_custom_call.1} parent=63 // pred_check
          %p360 = pneg %p196
        $region66: #{tpu_custom_call.1} parent=63 // pred_check_branch
          %362 = sbr.rel (%p360) target = $region68
        $region67: #{tpu_custom_call.1} parent=63 // pred_region
          %363 = dma.done [#allocation4], 1024
        $region68: #{tpu_custom_call.1} parent=63 // pred_fallthru
          _
        %s364 = smul.u32 16, %s28
        %p365 = scmp.lt.s32.totalorder %s364, 31
        %s366 = scalar_select %p365, %s364, 31
        %s367 = smul.addr %s366, 4
        %s368 = scalar_lea.vmem %s0, %s367
        %p369 = pneg %p49
        %p370 = pneg %p46
        %p371 = pneg %p70
        %p372 = pneg %p67
        %p373 = pneg %p91
        %p374 = pneg %p88
        %p375 = pneg %p112
        %p376 = pneg %p109
        %p377 = pneg %p133
        %p378 = pneg %p130
        %p379 = pneg %p154
        %p380 = pneg %p151
        %p381 = pneg %p175
        %p382 = pneg %p172
        %p383 = pneg %p196
        %p384 = pneg %p193
        %p385 = pneg %p217
        %p386 = pneg %p214
        %p387 = pneg %p238
        %p388 = pneg %p235
        %p389 = pneg %p259
        %p390 = pneg %p256
        %p391 = pneg %p285
        %p392 = pneg %p282
        %s393 = sand.u32 %s272, 1
        %s394 = scalar_lea.sflag [#allocation5], %s393
        %s395 = sand.u32 %s272, 1
        %s396 = scalar_lea.vmem [#allocation6], %s395
        %s397 = smul.u32 16, %s28
        %p398 = scmp.lt.s32.totalorder %s397, 31
        %s399 = scalar_select %p398, %s397, 31
        %s400 = smul.addr %s399, 4
        %s401 = scalar_lea.vmem %s0, %s400
        %s402 = smul.u32 16, %s28
        %v404 = vld [vmem:[%s401] sm:$0xf]
        %v405 = vld [vmem:[%s401 + $0x4] sm:$0xf]
        %v406 = vld [vmem:[%s401 + $0x8] sm:$0xf]
        %v407 = vld [vmem:[%s401 + $0xc] sm:$0xf]
        %v408 = vld [vmem:[%s401 + $0x10] sm:$0xf]
        %v409 = vld [vmem:[%s401 + $0x14] sm:$0xf]
        %v410 = vld [vmem:[%s401 + $0x18] sm:$0xf]
        %v411 = vld [vmem:[%s401 + $0x1c] sm:$0xf]
        %v412 = vld [vmem:[%s401 + $0x20] sm:$0xf]
        %v413 = vld [vmem:[%s401 + $0x24] sm:$0xf]
        %v414 = vld [vmem:[%s401 + $0x28] sm:$0xf]
        %v415 = vld [vmem:[%s401 + $0x2c] sm:$0xf]
        %v416 = vld [vmem:[%s401 + $0x30] sm:$0xf]
        %v417 = vld [vmem:[%s401 + $0x34] sm:$0xf]
        %v418 = vld [vmem:[%s401 + $0x38] sm:$0xf]
        %v419 = vld [vmem:[%s401 + $0x3c] sm:$0xf]
        %v420 = vld [vmem:[%s1] sm:$0xf]
        %v421 = vld [vmem:[%s1 + $0x4] sm:$0xf]
        %v422 = vld [vmem:[%s1 + $0x8] sm:$0xf]
        %v423 = vld [vmem:[%s1 + $0xc] sm:$0xf]
        %v424 = vld [vmem:[%s2] sm:$0x1]
        %v426 = vlaneseq
        %v427 = vshrl.u32 %v426, 7
        %v428 = vsub.s32 0, %v427
        %v429 = vrot.slane %v424, %v428
        %v447 = vunpack.c.l.b16 %v404
        %v448 = vunpack.c.l.b16 %v405
        %v449 = vunpack.c.l.b16 %v406
        %v450 = vunpack.c.l.b16 %v407
        %v451 = vunpack.c.l.b16 %v408
        %v452 = vunpack.c.l.b16 %v409
        %v453 = vunpack.c.l.b16 %v410
        %v454 = vunpack.c.l.b16 %v411
        %v455 = vunpack.c.l.b16 %v412
        %v456 = vunpack.c.l.b16 %v413
        %v457 = vunpack.c.l.b16 %v414
        %v458 = vunpack.c.l.b16 %v415
        %v459 = vunpack.c.l.b16 %v416
        %v460 = vunpack.c.l.b16 %v417
        %v461 = vunpack.c.l.b16 %v418
        %v462 = vunpack.c.l.b16 %v419
        %v463 = vpack.c.b16 %v448, %v447
        %v464 = vpack.c.b16 %v450, %v449
        %v465 = vpack.c.b16 %v452, %v451
        %v466 = vpack.c.b16 %v454, %v453
        %v467 = vpack.c.b16 %v456, %v455
        %v468 = vpack.c.b16 %v458, %v457
        %v469 = vpack.c.b16 %v460, %v459
        %v470 = vpack.c.b16 %v462, %v461
        %v475 = vunpack.c.l.b16 %v420
        %v476 = vunpack.c.l.b16 %v421
        %v477 = vunpack.c.l.b16 %v422
        %v478 = vunpack.c.l.b16 %v423
        %v479 = vpack.c.b16 %v476, %v475
        %v480 = vpack.c.b16 %v478, %v477
        %vm483 = vcmask 261120
        %v485 = vsel %vm483, %v463, 0
        %v488 = vsel %vm483, %v464, 0
        %v491 = vsel %vm483, %v465, 0
        %v494 = vsel %vm483, %v466, 0
        %v497 = vsel %vm483, %v467, 0
        %v500 = vsel %vm483, %v468, 0
        %v503 = vsel %vm483, %v469, 0
        %v506 = vsel %vm483, %v470, 0
        %508 = vmatprep.subr.bf16.mxu0 0
        %509 = vmatpush1.bf16.msra.mxu0 %v479
        %510 = vmatprep.subr.bf16.mxu0 0
        %511 = vmatpush1.bf16.msra.mxu0 %v480
        %512 = vmatprep.subr.bf16.mxu0 0
        %513 = vmatpush1.bf16.msra.mxu0 0
        %514 = vmatprep.subr.bf16.mxu0 0
        %515 = vmatpush1.bf16.msra.mxu0 0
        %516 = vmatprep.subr.bf16.mxu0 0
        %517 = vmatpush1.bf16.msra.mxu0 0
        %518 = vmatprep.subr.bf16.mxu0 0
        %519 = vmatpush1.bf16.msra.mxu0 0
        %520 = vmatprep.subr.bf16.mxu0 0
        %521 = vmatpush1.bf16.msra.mxu0 0
        %522 = vmatprep.subr.bf16.mxu0 0
        %523 = vmatpush1.bf16.msra.mxu0 0
        %524 = vmatprep.subr.bf16.mxu0 0
        %525 = vmatpush1.bf16.msra.mxu0 0
        %526 = vmatprep.subr.bf16.mxu0 0
        %527 = vmatpush1.bf16.msra.mxu0 0
        %528 = vmatprep.subr.bf16.mxu0 0
        %529 = vmatpush1.bf16.msra.mxu0 0
        %530 = vmatprep.subr.bf16.mxu0 0
        %531 = vmatpush1.bf16.msra.mxu0 0
        %532 = vmatprep.subr.bf16.mxu0 0
        %533 = vmatpush1.bf16.msra.mxu0 0
        %534 = vmatprep.subr.bf16.mxu0 0
        %535 = vmatpush1.bf16.msra.mxu0 0
        %536 = vmatprep.subr.bf16.mxu0 0
        %537 = vmatpush1.bf16.msra.mxu0 0
        %538 = vmatprep.subr.bf16.mxu0 0
        %539 = vmatpush1.bf16.msra.mxu0 0
        %540 = vmatprep.mubr.bf16.mxu0 0
        %541 = vmatmul.mubr.bf16.gmra.mrb[0].mxu0 %v485
        %v542 = vpop.f32.mrb[0].mxu0
        %v543 = vadd.f32 %v429, %v542
        %v544 = vpop.f32.mrb[0].mxu0
        %v545 = vpop.f32.mrb[0].mxu0
        %v546 = vadd.f32 %v429, %v545
        %v547 = vpop.f32.mrb[0].mxu0
        %548 = vmatprep.mubr.bf16.mxu0 0
        %549 = vmatmul.mubr.bf16.gmra.mrb[0].mxu0 %v488
        %v550 = vpop.f32.mrb[0].mxu0
        %v551 = vadd.f32 %v429, %v550
        %v552 = vpop.f32.mrb[0].mxu0
        %v553 = vpop.f32.mrb[0].mxu0
        %v554 = vadd.f32 %v429, %v553
        %v555 = vpop.f32.mrb[0].mxu0
        %556 = vmatprep.mubr.bf16.mxu0 0
        %557 = vmatmul.mubr.bf16.gmra.mrb[0].mxu0 %v491
        %v558 = vpop.f32.mrb[0].mxu0
        %v559 = vadd.f32 %v429, %v558
        %v560 = vpop.f32.mrb[0].mxu0
        %v561 = vpop.f32.mrb[0].mxu0
        %v562 = vadd.f32 %v429, %v561
        %v563 = vpop.f32.mrb[0].mxu0
        %564 = vmatprep.mubr.bf16.mxu0 0
        %565 = vmatmul.mubr.bf16.gmra.mrb[0].mxu0 %v494
        %v566 = vpop.f32.mrb[0].mxu0
        %v567 = vadd.f32 %v429, %v566
        %v568 = vpop.f32.mrb[0].mxu0
        %v569 = vpop.f32.mrb[0].mxu0
        %v570 = vadd.f32 %v429, %v569
        %v571 = vpop.f32.mrb[0].mxu0
        %572 = vmatprep.mubr.bf16.mxu0 0
        %573 = vmatmul.mubr.bf16.gmra.mrb[0].mxu0 %v497
        %v574 = vpop.f32.mrb[0].mxu0
        %v575 = vadd.f32 %v429, %v574
        %v576 = vpop.f32.mrb[0].mxu0
        %v577 = vpop.f32.mrb[0].mxu0
        %v578 = vadd.f32 %v429, %v577
        %v579 = vpop.f32.mrb[0].mxu0
        %580 = vmatprep.mubr.bf16.mxu0 0
        %581 = vmatmul.mubr.bf16.gmra.mrb[0].mxu0 %v500
        %v582 = vpop.f32.mrb[0].mxu0
        %v583 = vadd.f32 %v429, %v582
        %v584 = vpop.f32.mrb[0].mxu0
        %v585 = vpop.f32.mrb[0].mxu0
        %v586 = vadd.f32 %v429, %v585
        %v587 = vpop.f32.mrb[0].mxu0
        %588 = vmatprep.mubr.bf16.mxu0 0
        %589 = vmatmul.mubr.bf16.gmra.mrb[0].mxu0 %v503
        %v590 = vpop.f32.mrb[0].mxu0
        %v591 = vadd.f32 %v429, %v590
        %v592 = vpop.f32.mrb[0].mxu0
        %v593 = vpop.f32.mrb[0].mxu0
        %v594 = vadd.f32 %v429, %v593
        %v595 = vpop.f32.mrb[0].mxu0
        %596 = vmatprep.mubr.bf16.mxu0 0
        %597 = vmatmul.mubr.bf16.gmra.mrb[0].mxu0 %v506
        %v598 = vpop.f32.mrb[0].mxu0
        %v599 = vadd.f32 %v429, %v598
        %v600 = vpop.f32.mrb[0].mxu0
        %v601 = vpop.f32.mrb[0].mxu0
        %v602 = vadd.f32 %v429, %v601
        %v603 = vpop.f32.mrb[0].mxu0
        %604 = vdwg.mxu0
        %v605 = vxor.u32 %v543, 2147483648
        %v606 = vxor.u32 %v546, 2147483648
        %v607 = vxor.u32 %v551, 2147483648
        %v608 = vxor.u32 %v554, 2147483648
        %v609 = vxor.u32 %v559, 2147483648
        %v610 = vxor.u32 %v562, 2147483648
        %v611 = vxor.u32 %v567, 2147483648
        %v612 = vxor.u32 %v570, 2147483648
        %v613 = vxor.u32 %v575, 2147483648
        %v614 = vxor.u32 %v578, 2147483648
        %v615 = vxor.u32 %v583, 2147483648
        %v616 = vxor.u32 %v586, 2147483648
        %v617 = vxor.u32 %v591, 2147483648
        %v618 = vxor.u32 %v594, 2147483648
        %v619 = vxor.u32 %v599, 2147483648
        %v620 = vxor.u32 %v602, 2147483648
        %v621 = vmul.f32 %v605, 1.442695
        %v622 = vpow.pop %v621
        %v623 = vmul.f32 %v606, 1.442695
        %v624 = vpow.pop %v623
        %v625 = vmul.f32 %v607, 1.442695
        %v626 = vpow.pop %v625
        %v627 = vmul.f32 %v608, 1.442695
        %v628 = vpow.pop %v627
        %v629 = vmul.f32 %v609, 1.442695
        %v630 = vpow.pop %v629
        %v631 = vmul.f32 %v610, 1.442695
        %v632 = vpow.pop %v631
        %v633 = vmul.f32 %v611, 1.442695
        %v634 = vpow.pop %v633
        %v635 = vmul.f32 %v612, 1.442695
        %v636 = vpow.pop %v635
        %v637 = vmul.f32 %v613, 1.442695
        %v638 = vpow.pop %v637
        %v639 = vmul.f32 %v614, 1.442695
        %v640 = vpow.pop %v639
        %v641 = vmul.f32 %v615, 1.442695
        %v642 = vpow.pop %v641
        %v643 = vmul.f32 %v616, 1.442695
        %v644 = vpow.pop %v643
        %v645 = vmul.f32 %v617, 1.442695
        %v646 = vpow.pop %v645
        %v647 = vmul.f32 %v618, 1.442695
        %v648 = vpow.pop %v647
        %v649 = vmul.f32 %v619, 1.442695
        %v650 = vpow.pop %v649
        %v651 = vmul.f32 %v620, 1.442695
        %v652 = vpow.pop %v651
        %v653 = vadd.f32 %v622, 1.0
        %v654 = vadd.f32 %v624, 1.0
        %v655 = vadd.f32 %v626, 1.0
        %v656 = vadd.f32 %v628, 1.0
        %v657 = vadd.f32 %v630, 1.0
        %v658 = vadd.f32 %v632, 1.0
        %v659 = vadd.f32 %v634, 1.0
        %v660 = vadd.f32 %v636, 1.0
        %v661 = vadd.f32 %v638, 1.0
        %v662 = vadd.f32 %v640, 1.0
        %v663 = vadd.f32 %v642, 1.0
        %v664 = vadd.f32 %v644, 1.0
        %v665 = vadd.f32 %v646, 1.0
        %v666 = vadd.f32 %v648, 1.0
        %v667 = vadd.f32 %v650, 1.0
        %v668 = vadd.f32 %v652, 1.0
        %v669 = vrcp.pop %v653
        %v670 = vmul.f32 1.0, %v669
        %v671 = vrcp.pop %v654
        %v672 = vmul.f32 1.0, %v671
        %v673 = vrcp.pop %v655
        %v674 = vmul.f32 1.0, %v673
        %v675 = vrcp.pop %v656
        %v676 = vmul.f32 1.0, %v675
        %v677 = vrcp.pop %v657
        %v678 = vmul.f32 1.0, %v677
        %v679 = vrcp.pop %v658
        %v680 = vmul.f32 1.0, %v679
        %v681 = vrcp.pop %v659
        %v682 = vmul.f32 1.0, %v681
        %v683 = vrcp.pop %v660
        %v684 = vmul.f32 1.0, %v683
        %v685 = vrcp.pop %v661
        %v686 = vmul.f32 1.0, %v685
        %v687 = vrcp.pop %v662
        %v688 = vmul.f32 1.0, %v687
        %v689 = vrcp.pop %v663
        %v690 = vmul.f32 1.0, %v689
        %v691 = vrcp.pop %v664
        %v692 = vmul.f32 1.0, %v691
        %v693 = vrcp.pop %v665
        %v694 = vmul.f32 1.0, %v693
        %v695 = vrcp.pop %v666
        %v696 = vmul.f32 1.0, %v695
        %v697 = vrcp.pop %v667
        %v698 = vmul.f32 1.0, %v697
        %v699 = vrcp.pop %v668
        %v700 = vmul.f32 1.0, %v699
        %v701 = vpack.c.bf16 %v672, %v670
        %v702 = vpack.c.bf16 %v676, %v674
        %v703 = vpack.c.bf16 %v680, %v678
        %v704 = vpack.c.bf16 %v684, %v682
        %v705 = vpack.c.bf16 %v688, %v686
        %v706 = vpack.c.bf16 %v692, %v690
        %v707 = vpack.c.bf16 %v696, %v694
        %v708 = vpack.c.bf16 %v700, %v698
        %v709 = vld [vmem:[%s3] sm:$0xf]
        %v710 = vld [vmem:[%s3 + $0x4] sm:$0xf]
        %v711 = vld [vmem:[%s3 + $0x8] sm:$0xf]
        %v712 = vld [vmem:[%s3 + $0xc] sm:$0xf]
        %v713 = vld [vmem:[%s3 + $0x10] sm:$0xf]
        %v714 = vld [vmem:[%s3 + $0x14] sm:$0xf]
        %v715 = vld [vmem:[%s3 + $0x18] sm:$0xf]
        %v716 = vld [vmem:[%s3 + $0x1c] sm:$0xf]
        %v717 = vld [vmem:[%s3 + $0x20] sm:$0xf]
        %v718 = vld [vmem:[%s3 + $0x24] sm:$0xf]
        %v719 = vld [vmem:[%s3 + $0x28] sm:$0xf]
        %v720 = vld [vmem:[%s3 + $0x2c] sm:$0xf]
        %v721 = vld [vmem:[%s3 + $0x30] sm:$0xf]
        %v722 = vld [vmem:[%s3 + $0x34] sm:$0xf]
        %v723 = vld [vmem:[%s3 + $0x38] sm:$0xf]
        %v724 = vld [vmem:[%s3 + $0x3c] sm:$0xf]
        %v725 = vld [vmem:[%s4] sm:$0x1]
        %v727 = vlaneseq
        %v728 = vshrl.u32 %v727, 7
        %v729 = vsub.s32 0, %v728
        %v730 = vrot.slane %v725, %v729
        %v748 = vunpack.c.l.b16 %v709
        %v749 = vunpack.c.l.b16 %v710
        %v750 = vunpack.c.l.b16 %v711
        %v751 = vunpack.c.l.b16 %v712
        %v752 = vunpack.c.l.b16 %v713
        %v753 = vunpack.c.l.b16 %v714
        %v754 = vunpack.c.l.b16 %v715
        %v755 = vunpack.c.l.b16 %v716
        %v756 = vunpack.c.l.b16 %v717
        %v757 = vunpack.c.l.b16 %v718
        %v758 = vunpack.c.l.b16 %v719
        %v759 = vunpack.c.l.b16 %v720
        %v760 = vunpack.c.l.b16 %v721
        %v761 = vunpack.c.l.b16 %v722
        %v762 = vunpack.c.l.b16 %v723
        %v763 = vunpack.c.l.b16 %v724
        %v764 = vpack.c.b16 %v749, %v748
        %v765 = vpack.c.b16 %v751, %v750
        %v766 = vpack.c.b16 %v753, %v752
        %v767 = vpack.c.b16 %v755, %v754
        %v768 = vpack.c.b16 %v757, %v756
        %v769 = vpack.c.b16 %v759, %v758
        %v770 = vpack.c.b16 %v761, %v760
        %v771 = vpack.c.b16 %v763, %v762
        %780 = vmatprep.subr.bf16.mxu0 0
        %781 = vmatpush1.bf16.msra.mxu0 %v764
        %782 = vmatprep.subr.bf16.mxu0 0
        %783 = vmatpush1.bf16.msra.mxu0 %v765
        %784 = vmatprep.subr.bf16.mxu0 0
        %785 = vmatpush1.bf16.msra.mxu0 %v766
        %786 = vmatprep.subr.bf16.mxu0 0
        %787 = vmatpush1.bf16.msra.mxu0 %v767
        %788 = vmatprep.subr.bf16.mxu0 0
        %789 = vmatpush1.bf16.msra.mxu0 %v768
        %790 = vmatprep.subr.bf16.mxu0 0
        %791 = vmatpush1.bf16.msra.mxu0 %v769
        %792 = vmatprep.subr.bf16.mxu0 0
        %793 = vmatpush1.bf16.msra.mxu0 %v770
        %794 = vmatprep.subr.bf16.mxu0 0
        %795 = vmatpush1.bf16.msra.mxu0 %v771
        %796 = vmatprep.subr.bf16.mxu0 0
        %797 = vmatpush1.bf16.msra.mxu0 0
        %798 = vmatprep.subr.bf16.mxu0 0
        %799 = vmatpush1.bf16.msra.mxu0 0
        %800 = vmatprep.subr.bf16.mxu0 0
        %801 = vmatpush1.bf16.msra.mxu0 0
        %802 = vmatprep.subr.bf16.mxu0 0
        %803 = vmatpush1.bf16.msra.mxu0 0
        %804 = vmatprep.subr.bf16.mxu0 0
        %805 = vmatpush1.bf16.msra.mxu0 0
        %806 = vmatprep.subr.bf16.mxu0 0
        %807 = vmatpush1.bf16.msra.mxu0 0
        %808 = vmatprep.subr.bf16.mxu0 0
        %809 = vmatpush1.bf16.msra.mxu0 0
        %810 = vmatprep.subr.bf16.mxu0 0
        %811 = vmatpush1.bf16.msra.mxu0 0
        %812 = vmatprep.mubr.bf16.mxu0 0
        %813 = vmatmul.mubr.bf16.gmra.mrb[0].mxu0 %v701
        %v814 = vpop.f32.mrb[0].mxu0
        %v815 = vadd.f32 %v730, %v814
        %v816 = vpop.f32.mrb[0].mxu0
        %v817 = vpop.f32.mrb[0].mxu0
        %v818 = vadd.f32 %v730, %v817
        %v819 = vpop.f32.mrb[0].mxu0
        %820 = vmatprep.mubr.bf16.mxu0 0
        %821 = vmatmul.mubr.bf16.gmra.mrb[0].mxu0 %v702
        %v822 = vpop.f32.mrb[0].mxu0
        %v823 = vadd.f32 %v730, %v822
        %v824 = vpop.f32.mrb[0].mxu0
        %v825 = vpop.f32.mrb[0].mxu0
        %v826 = vadd.f32 %v730, %v825
        %v827 = vpop.f32.mrb[0].mxu0
        %828 = vmatprep.mubr.bf16.mxu0 0
        %829 = vmatmul.mubr.bf16.gmra.mrb[0].mxu0 %v703
        %v830 = vpop.f32.mrb[0].mxu0
        %v831 = vadd.f32 %v730, %v830
        %v832 = vpop.f32.mrb[0].mxu0
        %v833 = vpop.f32.mrb[0].mxu0
        %v834 = vadd.f32 %v730, %v833
        %v835 = vpop.f32.mrb[0].mxu0
        %836 = vmatprep.mubr.bf16.mxu0 0
        %837 = vmatmul.mubr.bf16.gmra.mrb[0].mxu0 %v704
        %v838 = vpop.f32.mrb[0].mxu0
        %v839 = vadd.f32 %v730, %v838
        %v840 = vpop.f32.mrb[0].mxu0
        %v841 = vpop.f32.mrb[0].mxu0
        %v842 = vadd.f32 %v730, %v841
        %v843 = vpop.f32.mrb[0].mxu0
        %844 = vmatprep.mubr.bf16.mxu0 0
        %845 = vmatmul.mubr.bf16.gmra.mrb[0].mxu0 %v705
        %v846 = vpop.f32.mrb[0].mxu0
        %v847 = vadd.f32 %v730, %v846
        %v848 = vpop.f32.mrb[0].mxu0
        %v849 = vpop.f32.mrb[0].mxu0
        %v850 = vadd.f32 %v730, %v849
        %v851 = vpop.f32.mrb[0].mxu0
        %852 = vmatprep.mubr.bf16.mxu0 0
        %853 = vmatmul.mubr.bf16.gmra.mrb[0].mxu0 %v706
        %v854 = vpop.f32.mrb[0].mxu0
        %v855 = vadd.f32 %v730, %v854
        %v856 = vpop.f32.mrb[0].mxu0
        %v857 = vpop.f32.mrb[0].mxu0
        %v858 = vadd.f32 %v730, %v857
        %v859 = vpop.f32.mrb[0].mxu0
        %860 = vmatprep.mubr.bf16.mxu0 0
        %861 = vmatmul.mubr.bf16.gmra.mrb[0].mxu0 %v707
        %v862 = vpop.f32.mrb[0].mxu0
        %v863 = vadd.f32 %v730, %v862
        %v864 = vpop.f32.mrb[0].mxu0
        %v865 = vpop.f32.mrb[0].mxu0
        %v866 = vadd.f32 %v730, %v865
        %v867 = vpop.f32.mrb[0].mxu0
        %868 = vmatprep.mubr.bf16.mxu0 0
        %869 = vmatmul.mubr.bf16.gmra.mrb[0].mxu0 %v708
        %v870 = vpop.f32.mrb[0].mxu0
        %v871 = vadd.f32 %v730, %v870
        %v872 = vpop.f32.mrb[0].mxu0
        %v873 = vpop.f32.mrb[0].mxu0
        %v874 = vadd.f32 %v730, %v873
        %v875 = vpop.f32.mrb[0].mxu0
        %876 = vdwg.mxu0
        %v877 = vxor.u32 %v815, 2147483648
        %v878 = vxor.u32 %v818, 2147483648
        %v879 = vxor.u32 %v823, 2147483648
        %v880 = vxor.u32 %v826, 2147483648
        %v881 = vxor.u32 %v831, 2147483648
        %v882 = vxor.u32 %v834, 2147483648
        %v883 = vxor.u32 %v839, 2147483648
        %v884 = vxor.u32 %v842, 2147483648
        %v885 = vxor.u32 %v847, 2147483648
        %v886 = vxor.u32 %v850, 2147483648
        %v887 = vxor.u32 %v855, 2147483648
        %v888 = vxor.u32 %v858, 2147483648
        %v889 = vxor.u32 %v863, 2147483648
        %v890 = vxor.u32 %v866, 2147483648
        %v891 = vxor.u32 %v871, 2147483648
        %v892 = vxor.u32 %v874, 2147483648
        %v893 = vmul.f32 %v877, 1.442695
        %v894 = vpow.pop %v893
        %v895 = vmul.f32 %v878, 1.442695
        %v896 = vpow.pop %v895
        %v897 = vmul.f32 %v879, 1.442695
        %v898 = vpow.pop %v897
        %v899 = vmul.f32 %v880, 1.442695
        %v900 = vpow.pop %v899
        %v901 = vmul.f32 %v881, 1.442695
        %v902 = vpow.pop %v901
        %v903 = vmul.f32 %v882, 1.442695
        %v904 = vpow.pop %v903
        %v905 = vmul.f32 %v883, 1.442695
        %v906 = vpow.pop %v905
        %v907 = vmul.f32 %v884, 1.442695
        %v908 = vpow.pop %v907
        %v909 = vmul.f32 %v885, 1.442695
        %v910 = vpow.pop %v909
        %v911 = vmul.f32 %v886, 1.442695
        %v912 = vpow.pop %v911
        %v913 = vmul.f32 %v887, 1.442695
        %v914 = vpow.pop %v913
        %v915 = vmul.f32 %v888, 1.442695
        %v916 = vpow.pop %v915
        %v917 = vmul.f32 %v889, 1.442695
        %v918 = vpow.pop %v917
        %v919 = vmul.f32 %v890, 1.442695
        %v920 = vpow.pop %v919
        %v921 = vmul.f32 %v891, 1.442695
        %v922 = vpow.pop %v921
        %v923 = vmul.f32 %v892, 1.442695
        %v924 = vpow.pop %v923
        %v925 = vadd.f32 %v894, 1.0
        %v926 = vadd.f32 %v896, 1.0
        %v927 = vadd.f32 %v898, 1.0
        %v928 = vadd.f32 %v900, 1.0
        %v929 = vadd.f32 %v902, 1.0
        %v930 = vadd.f32 %v904, 1.0
        %v931 = vadd.f32 %v906, 1.0
        %v932 = vadd.f32 %v908, 1.0
        %v933 = vadd.f32 %v910, 1.0
        %v934 = vadd.f32 %v912, 1.0
        %v935 = vadd.f32 %v914, 1.0
        %v936 = vadd.f32 %v916, 1.0
        %v937 = vadd.f32 %v918, 1.0
        %v938 = vadd.f32 %v920, 1.0
        %v939 = vadd.f32 %v922, 1.0
        %v940 = vadd.f32 %v924, 1.0
        %v941 = vrcp.pop %v925
        %v942 = vmul.f32 1.0, %v941
        %v943 = vrcp.pop %v926
        %v944 = vmul.f32 1.0, %v943
        %v945 = vrcp.pop %v927
        %v946 = vmul.f32 1.0, %v945
        %v947 = vrcp.pop %v928
        %v948 = vmul.f32 1.0, %v947
        %v949 = vrcp.pop %v929
        %v950 = vmul.f32 1.0, %v949
        %v951 = vrcp.pop %v930
        %v952 = vmul.f32 1.0, %v951
        %v953 = vrcp.pop %v931
        %v954 = vmul.f32 1.0, %v953
        %v955 = vrcp.pop %v932
        %v956 = vmul.f32 1.0, %v955
        %v957 = vrcp.pop %v933
        %v958 = vmul.f32 1.0, %v957
        %v959 = vrcp.pop %v934
        %v960 = vmul.f32 1.0, %v959
        %v961 = vrcp.pop %v935
        %v962 = vmul.f32 1.0, %v961
        %v963 = vrcp.pop %v936
        %v964 = vmul.f32 1.0, %v963
        %v965 = vrcp.pop %v937
        %v966 = vmul.f32 1.0, %v965
        %v967 = vrcp.pop %v938
        %v968 = vmul.f32 1.0, %v967
        %v969 = vrcp.pop %v939
        %v970 = vmul.f32 1.0, %v969
        %v971 = vrcp.pop %v940
        %v972 = vmul.f32 1.0, %v971
        %v973 = vpack.c.bf16 %v944, %v942
        %v974 = vpack.c.bf16 %v948, %v946
        %v975 = vpack.c.bf16 %v952, %v950
        %v976 = vpack.c.bf16 %v956, %v954
        %v977 = vpack.c.bf16 %v960, %v958
        %v978 = vpack.c.bf16 %v964, %v962
        %v979 = vpack.c.bf16 %v968, %v966
        %v980 = vpack.c.bf16 %v972, %v970
        %v981 = vld [vmem:[%s5] sm:$0xf]
        %v982 = vld [vmem:[%s5 + $0x4] sm:$0xf]
        %v983 = vld [vmem:[%s5 + $0x8] sm:$0xf]
        %v984 = vld [vmem:[%s5 + $0xc] sm:$0xf]
        %v985 = vld [vmem:[%s5 + $0x10] sm:$0xf]
        %v986 = vld [vmem:[%s5 + $0x14] sm:$0xf]
        %v987 = vld [vmem:[%s5 + $0x18] sm:$0xf]
        %v988 = vld [vmem:[%s5 + $0x1c] sm:$0xf]
        %v989 = vld [vmem:[%s5 + $0x20] sm:$0xf]
        %v990 = vld [vmem:[%s5 + $0x24] sm:$0xf]
        %v991 = vld [vmem:[%s5 + $0x28] sm:$0xf]
        %v992 = vld [vmem:[%s5 + $0x2c] sm:$0xf]
        %v993 = vld [vmem:[%s5 + $0x30] sm:$0xf]
        %v994 = vld [vmem:[%s5 + $0x34] sm:$0xf]
        %v995 = vld [vmem:[%s5 + $0x38] sm:$0xf]
        %v996 = vld [vmem:[%s5 + $0x3c] sm:$0xf]
        %v997 = vld [vmem:[%s6] sm:$0x1]
        %v999 = vlaneseq
        %v1000 = vshrl.u32 %v999, 7
        %v1001 = vsub.s32 0, %v1000
        %v1002 = vrot.slane %v997, %v1001
        %v1020 = vunpack.c.l.b16 %v981
        %v1021 = vunpack.c.l.b16 %v982
        %v1022 = vunpack.c.l.b16 %v983
        %v1023 = vunpack.c.l.b16 %v984
        %v1024 = vunpack.c.l.b16 %v985
        %v1025 = vunpack.c.l.b16 %v986
        %v1026 = vunpack.c.l.b16 %v987
        %v1027 = vunpack.c.l.b16 %v988
        %v1028 = vunpack.c.l.b16 %v989
        %v1029 = vunpack.c.l.b16 %v990
        %v1030 = vunpack.c.l.b16 %v991
        %v1031 = vunpack.c.l.b16 %v992
        %v1032 = vunpack.c.l.b16 %v993
        %v1033 = vunpack.c.l.b16 %v994
        %v1034 = vunpack.c.l.b16 %v995
        %v1035 = vunpack.c.l.b16 %v996
        %v1036 = vpack.c.b16 %v1021, %v1020
        %v1037 = vpack.c.b16 %v1023, %v1022
        %v1038 = vpack.c.b16 %v1025, %v1024
        %v1039 = vpack.c.b16 %v1027, %v1026
        %v1040 = vpack.c.b16 %v1029, %v1028
        %v1041 = vpack.c.b16 %v1031, %v1030
        %v1042 = vpack.c.b16 %v1033, %v1032
        %v1043 = vpack.c.b16 %v1035, %v1034
        %1052 = vmatprep.subr.bf16.mxu0 0
        %1053 = vmatpush1.bf16.msra.mxu0 %v1036
        %1054 = vmatprep.subr.bf16.mxu0 0
        %1055 = vmatpush1.bf16.msra.mxu0 %v1037
        %1056 = vmatprep.subr.bf16.mxu0 0
        %1057 = vmatpush1.bf16.msra.mxu0 %v1038
        %1058 = vmatprep.subr.bf16.mxu0 0
        %1059 = vmatpush1.bf16.msra.mxu0 %v1039
        %1060 = vmatprep.subr.bf16.mxu0 0
        %1061 = vmatpush1.bf16.msra.mxu0 %v1040
        %1062 = vmatprep.subr.bf16.mxu0 0
        %1063 = vmatpush1.bf16.msra.mxu0 %v1041
        %1064 = vmatprep.subr.bf16.mxu0 0
        %1065 = vmatpush1.bf16.msra.mxu0 %v1042
        %1066 = vmatprep.subr.bf16.mxu0 0
        %1067 = vmatpush1.bf16.msra.mxu0 %v1043
        %1068 = vmatprep.subr.bf16.mxu0 0
        %1069 = vmatpush1.bf16.msra.mxu0 0
        %1070 = vmatprep.subr.bf16.mxu0 0
        %1071 = vmatpush1.bf16.msra.mxu0 0
        %1072 = vmatprep.subr.bf16.mxu0 0
        %1073 = vmatpush1.bf16.msra.mxu0 0
        %1074 = vmatprep.subr.bf16.mxu0 0
        %1075 = vmatpush1.bf16.msra.mxu0 0
        %1076 = vmatprep.subr.bf16.mxu0 0
        %1077 = vmatpush1.bf16.msra.mxu0 0
        %1078 = vmatprep.subr.bf16.mxu0 0
        %1079 = vmatpush1.bf16.msra.mxu0 0
        %1080 = vmatprep.subr.bf16.mxu0 0
        %1081 = vmatpush1.bf16.msra.mxu0 0
        %1082 = vmatprep.subr.bf16.mxu0 0
        %1083 = vmatpush1.bf16.msra.mxu0 0
        %1084 = vmatprep.mubr.bf16.mxu0 0
        %1085 = vmatmul.mubr.bf16.gmra.mrb[0].mxu0 %v973
        %v1086 = vpop.f32.mrb[0].mxu0
        %v1087 = vadd.f32 %v1002, %v1086
        %v1088 = vpop.f32.mrb[0].mxu0
        %v1089 = vpop.f32.mrb[0].mxu0
        %v1090 = vadd.f32 %v1002, %v1089
        %v1091 = vpop.f32.mrb[0].mxu0
        %1092 = vmatprep.mubr.bf16.mxu0 0
        %1093 = vmatmul.mubr.bf16.gmra.mrb[0].mxu0 %v974
        %v1094 = vpop.f32.mrb[0].mxu0
        %v1095 = vadd.f32 %v1002, %v1094
        %v1096 = vpop.f32.mrb[0].mxu0
        %v1097 = vpop.f32.mrb[0].mxu0
        %v1098 = vadd.f32 %v1002, %v1097
        %v1099 = vpop.f32.mrb[0].mxu0
        %1100 = vmatprep.mubr.bf16.mxu0 0
        %1101 = vmatmul.mubr.bf16.gmra.mrb[0].mxu0 %v975
        %v1102 = vpop.f32.mrb[0].mxu0
        %v1103 = vadd.f32 %v1002, %v1102
        %v1104 = vpop.f32.mrb[0].mxu0
        %v1105 = vpop.f32.mrb[0].mxu0
        %v1106 = vadd.f32 %v1002, %v1105
        %v1107 = vpop.f32.mrb[0].mxu0
        %1108 = vmatprep.mubr.bf16.mxu0 0
        %1109 = vmatmul.mubr.bf16.gmra.mrb[0].mxu0 %v976
        %v1110 = vpop.f32.mrb[0].mxu0
        %v1111 = vadd.f32 %v1002, %v1110
        %v1112 = vpop.f32.mrb[0].mxu0
        %v1113 = vpop.f32.mrb[0].mxu0
        %v1114 = vadd.f32 %v1002, %v1113
        %v1115 = vpop.f32.mrb[0].mxu0
        %1116 = vmatprep.mubr.bf16.mxu0 0
        %1117 = vmatmul.mubr.bf16.gmra.mrb[0].mxu0 %v977
        %v1118 = vpop.f32.mrb[0].mxu0
        %v1119 = vadd.f32 %v1002, %v1118
        %v1120 = vpop.f32.mrb[0].mxu0
        %v1121 = vpop.f32.mrb[0].mxu0
        %v1122 = vadd.f32 %v1002, %v1121
        %v1123 = vpop.f32.mrb[0].mxu0
        %1124 = vmatprep.mubr.bf16.mxu0 0
        %1125 = vmatmul.mubr.bf16.gmra.mrb[0].mxu0 %v978
        %v1126 = vpop.f32.mrb[0].mxu0
        %v1127 = vadd.f32 %v1002, %v1126
        %v1128 = vpop.f32.mrb[0].mxu0
        %v1129 = vpop.f32.mrb[0].mxu0
        %v1130 = vadd.f32 %v1002, %v1129
        %v1131 = vpop.f32.mrb[0].mxu0
        %1132 = vmatprep.mubr.bf16.mxu0 0
        %1133 = vmatmul.mubr.bf16.gmra.mrb[0].mxu0 %v979
        %v1134 = vpop.f32.mrb[0].mxu0
        %v1135 = vadd.f32 %v1002, %v1134
        %v1136 = vpop.f32.mrb[0].mxu0
        %v1137 = vpop.f32.mrb[0].mxu0
        %v1138 = vadd.f32 %v1002, %v1137
        %v1139 = vpop.f32.mrb[0].mxu0
        %1140 = vmatprep.mubr.bf16.mxu0 0
        %1141 = vmatmul.mubr.bf16.gmra.mrb[0].mxu0 %v980
        %v1142 = vpop.f32.mrb[0].mxu0
        %v1143 = vadd.f32 %v1002, %v1142
        %v1144 = vpop.f32.mrb[0].mxu0
        %v1145 = vpop.f32.mrb[0].mxu0
        %v1146 = vadd.f32 %v1002, %v1145
        %v1147 = vpop.f32.mrb[0].mxu0
        %1148 = vdwg.mxu0
        %v1149 = vxor.u32 %v1087, 2147483648
        %v1150 = vxor.u32 %v1090, 2147483648
        %v1151 = vxor.u32 %v1095, 2147483648
        %v1152 = vxor.u32 %v1098, 2147483648
        %v1153 = vxor.u32 %v1103, 2147483648
        %v1154 = vxor.u32 %v1106, 2147483648
        %v1155 = vxor.u32 %v1111, 2147483648
        %v1156 = vxor.u32 %v1114, 2147483648
        %v1157 = vxor.u32 %v1119, 2147483648
        %v1158 = vxor.u32 %v1122, 2147483648
        %v1159 = vxor.u32 %v1127, 2147483648
        %v1160 = vxor.u32 %v1130, 2147483648
        %v1161 = vxor.u32 %v1135, 2147483648
        %v1162 = vxor.u32 %v1138, 2147483648
        %v1163 = vxor.u32 %v1143, 2147483648
        %v1164 = vxor.u32 %v1146, 2147483648
        %v1165 = vmul.f32 %v1149, 1.442695
        %v1166 = vpow.pop %v1165
        %v1167 = vmul.f32 %v1150, 1.442695
        %v1168 = vpow.pop %v1167
        %v1169 = vmul.f32 %v1151, 1.442695
        %v1170 = vpow.pop %v1169
        %v1171 = vmul.f32 %v1152, 1.442695
        %v1172 = vpow.pop %v1171
        %v1173 = vmul.f32 %v1153, 1.442695
        %v1174 = vpow.pop %v1173
        %v1175 = vmul.f32 %v1154, 1.442695
        %v1176 = vpow.pop %v1175
        %v1177 = vmul.f32 %v1155, 1.442695
        %v1178 = vpow.pop %v1177
        %v1179 = vmul.f32 %v1156, 1.442695
        %v1180 = vpow.pop %v1179
        %v1181 = vmul.f32 %v1157, 1.442695
        %v1182 = vpow.pop %v1181
        %v1183 = vmul.f32 %v1158, 1.442695
        %v1184 = vpow.pop %v1183
        %v1185 = vmul.f32 %v1159, 1.442695
        %v1186 = vpow.pop %v1185
        %v1187 = vmul.f32 %v1160, 1.442695
        %v1188 = vpow.pop %v1187
        %v1189 = vmul.f32 %v1161, 1.442695
        %v1190 = vpow.pop %v1189
        %v1191 = vmul.f32 %v1162, 1.442695
        %v1192 = vpow.pop %v1191
        %v1193 = vmul.f32 %v1163, 1.442695
        %v1194 = vpow.pop %v1193
        %v1195 = vmul.f32 %v1164, 1.442695
        %v1196 = vpow.pop %v1195
        %v1197 = vadd.f32 %v1166, 1.0
        %v1198 = vadd.f32 %v1168, 1.0
        %v1199 = vadd.f32 %v1170, 1.0
        %v1200 = vadd.f32 %v1172, 1.0
        %v1201 = vadd.f32 %v1174, 1.0
        %v1202 = vadd.f32 %v1176, 1.0
        %v1203 = vadd.f32 %v1178, 1.0
        %v1204 = vadd.f32 %v1180, 1.0
        %v1205 = vadd.f32 %v1182, 1.0
        %v1206 = vadd.f32 %v1184, 1.0
        %v1207 = vadd.f32 %v1186, 1.0
        %v1208 = vadd.f32 %v1188, 1.0
        %v1209 = vadd.f32 %v1190, 1.0
        %v1210 = vadd.f32 %v1192, 1.0
        %v1211 = vadd.f32 %v1194, 1.0
        %v1212 = vadd.f32 %v1196, 1.0
        %v1213 = vrcp.pop %v1197
        %v1214 = vmul.f32 1.0, %v1213
        %v1215 = vrcp.pop %v1198
        %v1216 = vmul.f32 1.0, %v1215
        %v1217 = vrcp.pop %v1199
        %v1218 = vmul.f32 1.0, %v1217
        %v1219 = vrcp.pop %v1200
        %v1220 = vmul.f32 1.0, %v1219
        %v1221 = vrcp.pop %v1201
        %v1222 = vmul.f32 1.0, %v1221
        %v1223 = vrcp.pop %v1202
        %v1224 = vmul.f32 1.0, %v1223
        %v1225 = vrcp.pop %v1203
        %v1226 = vmul.f32 1.0, %v1225
        %v1227 = vrcp.pop %v1204
        %v1228 = vmul.f32 1.0, %v1227
        %v1229 = vrcp.pop %v1205
        %v1230 = vmul.f32 1.0, %v1229
        %v1231 = vrcp.pop %v1206
        %v1232 = vmul.f32 1.0, %v1231
        %v1233 = vrcp.pop %v1207
        %v1234 = vmul.f32 1.0, %v1233
        %v1235 = vrcp.pop %v1208
        %v1236 = vmul.f32 1.0, %v1235
        %v1237 = vrcp.pop %v1209
        %v1238 = vmul.f32 1.0, %v1237
        %v1239 = vrcp.pop %v1210
        %v1240 = vmul.f32 1.0, %v1239
        %v1241 = vrcp.pop %v1211
        %v1242 = vmul.f32 1.0, %v1241
        %v1243 = vrcp.pop %v1212
        %v1244 = vmul.f32 1.0, %v1243
        %v1245 = vpack.c.bf16 %v1216, %v1214
        %v1246 = vpack.c.bf16 %v1220, %v1218
        %v1247 = vpack.c.bf16 %v1224, %v1222
        %v1248 = vpack.c.bf16 %v1228, %v1226
        %v1249 = vpack.c.bf16 %v1232, %v1230
        %v1250 = vpack.c.bf16 %v1236, %v1234
        %v1251 = vpack.c.bf16 %v1240, %v1238
        %v1252 = vpack.c.bf16 %v1244, %v1242
        %v1253 = vld [vmem:[#allocation3] sm:$0xf]
        %v1254 = vld [vmem:[#allocation3 + $0x4] sm:$0xf]
        %v1255 = vld [vmem:[#allocation3 + $0x8] sm:$0xf]
        %v1256 = vld [vmem:[#allocation3 + $0xc] sm:$0xf]
        %v1257 = vld [vmem:[#allocation3 + $0x10] sm:$0xf]
        %v1258 = vld [vmem:[#allocation3 + $0x14] sm:$0xf]
        %v1259 = vld [vmem:[#allocation3 + $0x18] sm:$0xf]
        %v1260 = vld [vmem:[#allocation3 + $0x1c] sm:$0xf]
        %v1261 = vld [vmem:[#allocation3 + $0x20] sm:$0xf]
        %v1262 = vld [vmem:[#allocation3 + $0x24] sm:$0xf]
        %v1263 = vld [vmem:[#allocation3 + $0x28] sm:$0xf]
        %v1264 = vld [vmem:[#allocation3 + $0x2c] sm:$0xf]
        %v1265 = vld [vmem:[#allocation3 + $0x30] sm:$0xf]
        %v1266 = vld [vmem:[#allocation3 + $0x34] sm:$0xf]
        %v1267 = vld [vmem:[#allocation3 + $0x38] sm:$0xf]
        %v1268 = vld [vmem:[#allocation3 + $0x3c] sm:$0xf]
        %v1269 = vld [vmem:[%s8] sm:$0x1]
        %v1271 = vlaneseq
        %v1272 = vshrl.u32 %v1271, 7
        %v1273 = vsub.s32 0, %v1272
        %v1274 = vrot.slane %v1269, %v1273
        %v1292 = vunpack.c.l.b16 %v1253
        %v1293 = vunpack.c.l.b16 %v1254
        %v1294 = vunpack.c.l.b16 %v1255
        %v1295 = vunpack.c.l.b16 %v1256
        %v1296 = vunpack.c.l.b16 %v1257
        %v1297 = vunpack.c.l.b16 %v1258
        %v1298 = vunpack.c.l.b16 %v1259
        %v1299 = vunpack.c.l.b16 %v1260
        %v1300 = vunpack.c.l.b16 %v1261
        %v1301 = vunpack.c.l.b16 %v1262
        %v1302 = vunpack.c.l.b16 %v1263
        %v1303 = vunpack.c.l.b16 %v1264
        %v1304 = vunpack.c.l.b16 %v1265
        %v1305 = vunpack.c.l.b16 %v1266
        %v1306 = vunpack.c.l.b16 %v1267
        %v1307 = vunpack.c.l.b16 %v1268
        %v1308 = vpack.c.b16 %v1293, %v1292
        %v1309 = vpack.c.b16 %v1295, %v1294
        %v1310 = vpack.c.b16 %v1297, %v1296
        %v1311 = vpack.c.b16 %v1299, %v1298
        %v1312 = vpack.c.b16 %v1301, %v1300
        %v1313 = vpack.c.b16 %v1303, %v1302
        %v1314 = vpack.c.b16 %v1305, %v1304
        %v1315 = vpack.c.b16 %v1307, %v1306
        %1324 = vmatprep.subr.bf16.mxu0 0
        %1325 = vmatpush1.bf16.msra.mxu0 %v1308
        %1326 = vmatprep.subr.bf16.mxu0 0
        %1327 = vmatpush1.bf16.msra.mxu0 %v1309
        %1328 = vmatprep.subr.bf16.mxu0 0
        %1329 = vmatpush1.bf16.msra.mxu0 %v1310
        %1330 = vmatprep.subr.bf16.mxu0 0
        %1331 = vmatpush1.bf16.msra.mxu0 %v1311
        %1332 = vmatprep.subr.bf16.mxu0 0
        %1333 = vmatpush1.bf16.msra.mxu0 %v1312
        %1334 = vmatprep.subr.bf16.mxu0 0
        %1335 = vmatpush1.bf16.msra.mxu0 %v1313
        %1336 = vmatprep.subr.bf16.mxu0 0
        %1337 = vmatpush1.bf16.msra.mxu0 %v1314
        %1338 = vmatprep.subr.bf16.mxu0 0
        %1339 = vmatpush1.bf16.msra.mxu0 %v1315
        %1340 = vmatprep.subr.bf16.mxu0 0
        %1341 = vmatpush1.bf16.msra.mxu0 0
        %1342 = vmatprep.subr.bf16.mxu0 0
        %1343 = vmatpush1.bf16.msra.mxu0 0
        %1344 = vmatprep.subr.bf16.mxu0 0
        %1345 = vmatpush1.bf16.msra.mxu0 0
        %1346 = vmatprep.subr.bf16.mxu0 0
        %1347 = vmatpush1.bf16.msra.mxu0 0
        %1348 = vmatprep.subr.bf16.mxu0 0
        %1349 = vmatpush1.bf16.msra.mxu0 0
        %1350 = vmatprep.subr.bf16.mxu0 0
        %1351 = vmatpush1.bf16.msra.mxu0 0
        %1352 = vmatprep.subr.bf16.mxu0 0
        %1353 = vmatpush1.bf16.msra.mxu0 0
        %1354 = vmatprep.subr.bf16.mxu0 0
        %1355 = vmatpush1.bf16.msra.mxu0 0
        %1356 = vmatprep.mubr.bf16.mxu0 0
        %1357 = vmatmul.mubr.bf16.gmra.mrb[0].mxu0 %v1245
        %v1358 = vpop.f32.mrb[0].mxu0
        %v1359 = vadd.f32 %v1274, %v1358
        %v1360 = vpop.f32.mrb[0].mxu0
        %v1361 = vpop.f32.mrb[0].mxu0
        %v1362 = vadd.f32 %v1274, %v1361
        %v1363 = vpop.f32.mrb[0].mxu0
        %1364 = vmatprep.mubr.bf16.mxu0 0
        %1365 = vmatmul.mubr.bf16.gmra.mrb[0].mxu0 %v1246
        %v1366 = vpop.f32.mrb[0].mxu0
        %v1367 = vadd.f32 %v1274, %v1366
        %v1368 = vpop.f32.mrb[0].mxu0
        %v1369 = vpop.f32.mrb[0].mxu0
        %v1370 = vadd.f32 %v1274, %v1369
        %v1371 = vpop.f32.mrb[0].mxu0
        %1372 = vmatprep.mubr.bf16.mxu0 0
        %1373 = vmatmul.mubr.bf16.gmra.mrb[0].mxu0 %v1247
        %v1374 = vpop.f32.mrb[0].mxu0
        %v1375 = vadd.f32 %v1274, %v1374
        %v1376 = vpop.f32.mrb[0].mxu0
        %v1377 = vpop.f32.mrb[0].mxu0
        %v1378 = vadd.f32 %v1274, %v1377
        %v1379 = vpop.f32.mrb[0].mxu0
        %1380 = vmatprep.mubr.bf16.mxu0 0
        %1381 = vmatmul.mubr.bf16.gmra.mrb[0].mxu0 %v1248
        %v1382 = vpop.f32.mrb[0].mxu0
        %v1383 = vadd.f32 %v1274, %v1382
        %v1384 = vpop.f32.mrb[0].mxu0
        %v1385 = vpop.f32.mrb[0].mxu0
        %v1386 = vadd.f32 %v1274, %v1385
        %v1387 = vpop.f32.mrb[0].mxu0
        %1388 = vmatprep.mubr.bf16.mxu0 0
        %1389 = vmatmul.mubr.bf16.gmra.mrb[0].mxu0 %v1249
        %v1390 = vpop.f32.mrb[0].mxu0
        %v1391 = vadd.f32 %v1274, %v1390
        %v1392 = vpop.f32.mrb[0].mxu0
        %v1393 = vpop.f32.mrb[0].mxu0
        %v1394 = vadd.f32 %v1274, %v1393
        %v1395 = vpop.f32.mrb[0].mxu0
        %1396 = vmatprep.mubr.bf16.mxu0 0
        %1397 = vmatmul.mubr.bf16.gmra.mrb[0].mxu0 %v1250
        %v1398 = vpop.f32.mrb[0].mxu0
        %v1399 = vadd.f32 %v1274, %v1398
        %v1400 = vpop.f32.mrb[0].mxu0
        %v1401 = vpop.f32.mrb[0].mxu0
        %v1402 = vadd.f32 %v1274, %v1401
        %v1403 = vpop.f32.mrb[0].mxu0
        %1404 = vmatprep.mubr.bf16.mxu0 0
        %1405 = vmatmul.mubr.bf16.gmra.mrb[0].mxu0 %v1251
        %v1406 = vpop.f32.mrb[0].mxu0
        %v1407 = vadd.f32 %v1274, %v1406
        %v1408 = vpop.f32.mrb[0].mxu0
        %v1409 = vpop.f32.mrb[0].mxu0
        %v1410 = vadd.f32 %v1274, %v1409
        %v1411 = vpop.f32.mrb[0].mxu0
        %1412 = vmatprep.mubr.bf16.mxu0 0
        %1413 = vmatmul.mubr.bf16.gmra.mrb[0].mxu0 %v1252
        %v1414 = vpop.f32.mrb[0].mxu0
        %v1415 = vadd.f32 %v1274, %v1414
        %v1416 = vpop.f32.mrb[0].mxu0
        %v1417 = vpop.f32.mrb[0].mxu0
        %v1418 = vadd.f32 %v1274, %v1417
        %v1419 = vpop.f32.mrb[0].mxu0
        %1420 = vdwg.mxu0
        %v1421 = vxor.u32 %v1359, 2147483648
        %v1422 = vxor.u32 %v1362, 2147483648
        %v1423 = vxor.u32 %v1367, 2147483648
        %v1424 = vxor.u32 %v1370, 2147483648
        %v1425 = vxor.u32 %v1375, 2147483648
        %v1426 = vxor.u32 %v1378, 2147483648
        %v1427 = vxor.u32 %v1383, 2147483648
        %v1428 = vxor.u32 %v1386, 2147483648
        %v1429 = vxor.u32 %v1391, 2147483648
        %v1430 = vxor.u32 %v1394, 2147483648
        %v1431 = vxor.u32 %v1399, 2147483648
        %v1432 = vxor.u32 %v1402, 2147483648
        %v1433 = vxor.u32 %v1407, 2147483648
        %v1434 = vxor.u32 %v1410, 2147483648
        %v1435 = vxor.u32 %v1415, 2147483648
        %v1436 = vxor.u32 %v1418, 2147483648
        %v1437 = vmul.f32 %v1421, 1.442695
        %v1438 = vpow.pop %v1437
        %v1439 = vmul.f32 %v1422, 1.442695
        %v1440 = vpow.pop %v1439
        %v1441 = vmul.f32 %v1423, 1.442695
        %v1442 = vpow.pop %v1441
        %v1443 = vmul.f32 %v1424, 1.442695
        %v1444 = vpow.pop %v1443
        %v1445 = vmul.f32 %v1425, 1.442695
        %v1446 = vpow.pop %v1445
        %v1447 = vmul.f32 %v1426, 1.442695
        %v1448 = vpow.pop %v1447
        %v1449 = vmul.f32 %v1427, 1.442695
        %v1450 = vpow.pop %v1449
        %v1451 = vmul.f32 %v1428, 1.442695
        %v1452 = vpow.pop %v1451
        %v1453 = vmul.f32 %v1429, 1.442695
        %v1454 = vpow.pop %v1453
        %v1455 = vmul.f32 %v1430, 1.442695
        %v1456 = vpow.pop %v1455
        %v1457 = vmul.f32 %v1431, 1.442695
        %v1458 = vpow.pop %v1457
        %v1459 = vmul.f32 %v1432, 1.442695
        %v1460 = vpow.pop %v1459
        %v1461 = vmul.f32 %v1433, 1.442695
        %v1462 = vpow.pop %v1461
        %v1463 = vmul.f32 %v1434, 1.442695
        %v1464 = vpow.pop %v1463
        %v1465 = vmul.f32 %v1435, 1.442695
        %v1466 = vpow.pop %v1465
        %v1467 = vmul.f32 %v1436, 1.442695
        %v1468 = vpow.pop %v1467
        %v1469 = vadd.f32 %v1438, 1.0
        %v1470 = vadd.f32 %v1440, 1.0
        %v1471 = vadd.f32 %v1442, 1.0
        %v1472 = vadd.f32 %v1444, 1.0
        %v1473 = vadd.f32 %v1446, 1.0
        %v1474 = vadd.f32 %v1448, 1.0
        %v1475 = vadd.f32 %v1450, 1.0
        %v1476 = vadd.f32 %v1452, 1.0
        %v1477 = vadd.f32 %v1454, 1.0
        %v1478 = vadd.f32 %v1456, 1.0
        %v1479 = vadd.f32 %v1458, 1.0
        %v1480 = vadd.f32 %v1460, 1.0
        %v1481 = vadd.f32 %v1462, 1.0
        %v1482 = vadd.f32 %v1464, 1.0
        %v1483 = vadd.f32 %v1466, 1.0
        %v1484 = vadd.f32 %v1468, 1.0
        %v1485 = vrcp.pop %v1469
        %v1486 = vmul.f32 1.0, %v1485
        %v1487 = vrcp.pop %v1470
        %v1488 = vmul.f32 1.0, %v1487
        %v1489 = vrcp.pop %v1471
        %v1490 = vmul.f32 1.0, %v1489
        %v1491 = vrcp.pop %v1472
        %v1492 = vmul.f32 1.0, %v1491
        %v1493 = vrcp.pop %v1473
        %v1494 = vmul.f32 1.0, %v1493
        %v1495 = vrcp.pop %v1474
        %v1496 = vmul.f32 1.0, %v1495
        %v1497 = vrcp.pop %v1475
        %v1498 = vmul.f32 1.0, %v1497
        %v1499 = vrcp.pop %v1476
        %v1500 = vmul.f32 1.0, %v1499
        %v1501 = vrcp.pop %v1477
        %v1502 = vmul.f32 1.0, %v1501
        %v1503 = vrcp.pop %v1478
        %v1504 = vmul.f32 1.0, %v1503
        %v1505 = vrcp.pop %v1479
        %v1506 = vmul.f32 1.0, %v1505
        %v1507 = vrcp.pop %v1480
        %v1508 = vmul.f32 1.0, %v1507
        %v1509 = vrcp.pop %v1481
        %v1510 = vmul.f32 1.0, %v1509
        %v1511 = vrcp.pop %v1482
        %v1512 = vmul.f32 1.0, %v1511
        %v1513 = vrcp.pop %v1483
        %v1514 = vmul.f32 1.0, %v1513
        %v1515 = vrcp.pop %v1484
        %v1516 = vmul.f32 1.0, %v1515
        %v1517 = vld [vmem:[%s9] sm:$0xf]
        %v1518 = vpack.c.bf16 %v1488, %v1486
        %v1519 = vpack.c.bf16 %v1492, %v1490
        %v1520 = vpack.c.bf16 %v1496, %v1494
        %v1521 = vpack.c.bf16 %v1500, %v1498
        %v1522 = vpack.c.bf16 %v1504, %v1502
        %v1523 = vpack.c.bf16 %v1508, %v1506
        %v1524 = vpack.c.bf16 %v1512, %v1510
        %v1525 = vpack.c.bf16 %v1516, %v1514
        %1526 = vmatprep.subr.bf16.mxu0 0
        %1527 = vmatpush1.bf16.xpose.msra.mxu0 %v1518
        %1528 = vmatprep.subr.bf16.mxu0 0
        %1529 = vmatpush1.bf16.xpose.msra.mxu0 %v1519
        %1530 = vmatprep.subr.bf16.mxu0 0
        %1531 = vmatpush1.bf16.xpose.msra.mxu0 %v1520
        %1532 = vmatprep.subr.bf16.mxu0 0
        %1533 = vmatpush1.bf16.xpose.msra.mxu0 %v1521
        %1534 = vmatprep.subr.bf16.mxu0 0
        %1535 = vmatpush1.bf16.xpose.msra.mxu0 %v1522
        %1536 = vmatprep.subr.bf16.mxu0 0
        %1537 = vmatpush1.bf16.xpose.msra.mxu0 %v1523
        %1538 = vmatprep.subr.bf16.mxu0 0
        %1539 = vmatpush1.bf16.xpose.msra.mxu0 %v1524
        %1540 = vmatprep.subr.bf16.mxu0 0
        %1541 = vmatpush1.bf16.xpose.msra.mxu0 %v1525
        %1542 = vmatprep.subr.bf16.mxu0 0
        %1543 = vmatpush1.bf16.xpose.msra.mxu0 0
        %1544 = vmatprep.subr.bf16.mxu0 0
        %1545 = vmatpush1.bf16.xpose.msra.mxu0 0
        %1546 = vmatprep.subr.bf16.mxu0 0
        %1547 = vmatpush1.bf16.xpose.msra.mxu0 0
        %1548 = vmatprep.subr.bf16.mxu0 0
        %1549 = vmatpush1.bf16.xpose.msra.mxu0 0
        %1550 = vmatprep.subr.bf16.mxu0 0
        %1551 = vmatpush1.bf16.xpose.msra.mxu0 0
        %1552 = vmatprep.subr.bf16.mxu0 0
        %1553 = vmatpush1.bf16.xpose.msra.mxu0 0
        %1554 = vmatprep.subr.bf16.mxu0 0
        %1555 = vmatpush1.bf16.xpose.msra.mxu0 0
        %1556 = vmatprep.subr.bf16.mxu0 0
        %1557 = vmatpush1.bf16.xpose.msra.mxu0 0
        %1558 = vmatprep.mubr.bf16.mxu0 0
        %1559 = vmatmul.mubr.bf16.gmra.mrb[0].mxu0 %v1517
        %v1560 = vpop.f32.mrb[0].mxu0
        %v1561 = vadd.f32 0.0, %v1560
        %v1562 = vpop.f32.mrb[0].mxu0
        %v1563 = vpop.f32.mrb[0].mxu0
        %v1564 = vpop.f32.mrb[0].mxu0
        %1565 = vdwg.mxu0
        %v1566 = vld [vmem:[#allocation2] sm:$0x1]
        %1568 = vset.pattern.permute.xlu0 0
        %1569 = vperm.xlu0 %1568, %v1566
        %v1570 = vpop.permute.xlu0 %1569
        %v1572 = vlaneseq
        %v1573 = vshrl.u32 %v1572, 7
        %v1574 = vsub.s32 0, %v1573
        %v1575 = vrot.slane %v1570, %v1574
        %v1576 = vadd.f32 %v1561, %v1575
        %v1577 = vxor.u32 %v1576, 2147483648
        %v1578 = vmul.f32 %v1577, 1.442695
        %v1579 = vpow.pop %v1578
        %v1580 = vadd.f32 %v1579, 1.0
        %v1581 = vrcp.pop %v1580
        %v1582 = vmul.f32 1.0, %v1581
        %1583 = vst [vmem:[%s396] sm:$0x1] %v1582
        %s1584 = sand.u32 %s272, 1
        %s1585 = scalar_lea.sflag [#allocation5], %s1584
        %s1586 = sand.u32 %s272, 1
        %s1587 = scalar_lea.vmem [#allocation6], %s1586
        // Predicated region
        $region69: #{tpu_custom_call.1} parent=63 // pred_check
          %p1588 = pneg %p282
        $region70: #{tpu_custom_call.1} parent=63 // pred_check_branch
          %1590 = sbr.rel (%p1588) target = $region72
        $region71: #{tpu_custom_call.1} parent=63 // pred_region
          %s1592 = ssub.s32 16, 16
          %1593 = vsyncadd %s1585, %s1592
          %s1594 = smul.addr %s28, 16
          %s1595 = scalar_lea.hbm %s11, %s1594
          %s1597 = sshll.u32 %s1587, 4
          %s1598 = int_to_ptr.vmem [resolvable:$true] %s1597
          %1600 = dma.vmem_to_hbm [thread:$0]  %s1598, 16, %s1595, %s1585
        $region72: #{tpu_custom_call.1} parent=63 // pred_fallthru
          _
      $region64: #{tpu_custom_call.1} parent=5 // pred_fallthru
        _
      %p1601 = scmp.le.s32.totalorder 2, %s23
      // Predicated region
      $region73: #{tpu_custom_call.1} parent=5 // pred_check
        %p1602 = pneg %p1601
      $region74: #{tpu_custom_call.1} parent=5 // pred_check_branch
        %1604 = sbr.rel (%p1602) target = $region76
      $region75: #{tpu_custom_call.1} parent=5 // pred_region
        %s1605 = ssub.s32 %s23, 2
        // Predicated region
        $region77: #{tpu_custom_call.1} parent=75 // pred_check
          %p1606 = pneg %p288
        $region78: #{tpu_custom_call.1} parent=75 // pred_check_branch
          %1608 = sbr.rel (%p1606) target = $region80
        $region79: #{tpu_custom_call.1} parent=75 // pred_region
          %s1609 = sand.u32 %s273, 1
          %s1610 = scalar_lea.sflag [#allocation5], %s1609
          %s1611 = sand.u32 %s273, 1
          %s1612 = scalar_lea.vmem [#allocation6], %s1611
          %1613 = dma.done %s1610, 16
        $region80: #{tpu_custom_call.1} parent=75 // pred_fallthru
          _
      $region76: #{tpu_custom_call.1} parent=5 // pred_fallthru
        _
    $region6: #{tpu_custom_call.1} parent=1 // loop_footer
      %s27 = sadd.s32 1, %s23
    $region7: #{tpu_custom_call.1} parent=1 // loop_footer_branch
      %22 = sbr.rel target = $region3
    $region8: #{tpu_custom_call.1} parent=1 // loop_exit
      _
    %1614 = vsyncpa [#allocation4], 1
    %s1615 = scalar_lea.sflag [#allocation4], 1
    %1616 = vsyncpa %s1615, 1
    %1617 = vsyncpa [#allocation5], 1
    %s1618 = scalar_lea.sflag [#allocation5], 1
    %1619 = vsyncpa %s1618, 1

</llo_original>
